<compile_context>
chip_gen: v7x
topology: tpu7x:2x2x1
jax: 0.10.0
libtpu: 0.0.40
codegen_flags: <defaults>
</compile_context>

<pallas_src>
import functools

import jax
import jax.numpy as jnp
from jax.experimental import pallas as pl
from jax.experimental.pallas import tpu as pltpu


def _banded_conv_kernel(x_ref, xh_ref, w_ref, b_ref, g_ref, bt_ref, o_ref, *,
                        kernel_width, num_freq_bins, eps):
    # x_ref:  (T_TILE, N, C_in*F)      main input rows of this time tile
    # xh_ref: (HALO_BLK, N, C_in*F)    halo rows (first kw-1 rows of tile t+1)
    # w_ref:  (kw, C_in, C_out*F)      lane-broadcast conv weights for this band
    # b_ref:  (1, C_out*F)             conv bias, broadcast over F
    # g_ref:  (1, C_out*F)             LayerNorm gamma
    # bt_ref: (1, C_out*F)             LayerNorm beta
    # o_ref:  (T_TILE, N, C_out*F)     output tile (lane-dense)
    kw = kernel_width
    f = num_freq_bins
    t_tile, n, cf_out = o_ref.shape
    c_in = x_ref.shape[-1] // f
    c_out = cf_out // f

    # Load + cast the weight slab once; index the in-register array below.
    w = w_ref[...].astype(jnp.float32)                       # (kw, C_in, C_out*F)

    acc = jnp.zeros((t_tile, n, cf_out), jnp.float32)
    for ci in range(c_in):
        lo, hi = ci * f, (ci + 1) * f
        # Lane-replicate the ci-th F-wide chunk across the C_out groups once
        # per ci (hoisted over the kw taps):  (Tw, N, F) -> (Tw, N, C_out*F).
        xm = x_ref[:, :, lo:hi].astype(jnp.float32)
        xm = jnp.concatenate([xm] * c_out, axis=-1)          # (T_TILE, N, C_out*F)
        if kw > 1:
            xh = xh_ref[:kw - 1, :, lo:hi].astype(jnp.float32)
            xh = jnp.concatenate([xh] * c_out, axis=-1)      # (kw-1, N, C_out*F)
            xw = jnp.concatenate([xm, xh], axis=0)           # (T_TILE+kw-1, N, C_out*F)
        else:
            xw = xm
        # Temporal conv: unrolled VPU MACs; tap slices are along the outer
        # (time) dim of xw, so they are plain offsets (no relayout).
        for wi in range(kw):
            acc = acc + xw[wi:wi + t_tile] * w[wi, ci]

    acc = acc + b_ref[0].astype(jnp.float32)
    acc = jnp.maximum(acc, 0.0)                              # ReLU

    # LayerNorm over (C_out, F) per (t, n): a single 128-lane reduce
    # (biased variance, matching torch).
    mean = jnp.mean(acc, axis=-1, keepdims=True)
    cent = acc - mean
    var = jnp.mean(cent * cent, axis=-1, keepdims=True)
    normed = cent * jax.lax.rsqrt(var + eps)
    out = (normed * g_ref[0].astype(jnp.float32)
           + bt_ref[0].astype(jnp.float32))
    o_ref[...] = out.astype(o_ref.dtype)


def banded_conv2d(x, weight, bias, gamma, beta, *, eps=1e-5, t_tile=256):
    """Pallas implementation of BandedConv2D.forward.

    x:      (T_in, N, B, C_in, F)
    weight: (B, C_out, C_in, 1, kw)   -- torch Conv2d weight layout per band
    bias:   (B, C_out)
    gamma:  (B, C_out, F)             -- LayerNorm((C_out, F)) weight per band
    beta:   (B, C_out, F)             -- LayerNorm((C_out, F)) bias per band
    returns (T_out, N, B, C_out, F) with T_out = T_in - kw + 1

    t_tile: time-tile size.  Default 256 keeps the double-buffered working set
    well under v7x's 64 MiB VMEM; it can be raised on v6e/v5e (128 MiB) for
    fewer, larger grid steps.
    """
    T_in, N, B, C_in, F = x.shape
    _, C_out, _, _, kw = weight.shape
    T_out = T_in - kw + 1
    CFi, CFo = C_in * F, C_out * F

    halo = kw - 1
    halo_blk = max(halo, 1)

    # Tile size along T_out: multiple of halo_blk so the halo BlockSpec's
    # element offset (t+1)*tt is an exact block index.
    tt = min(t_tile, T_out)
    tt = -(-tt // halo_blk) * halo_blk
    n_t = -(-T_out // tt)
    T_out_p = n_t * tt
    T_in_p = T_out_p + halo_blk

    # ---- wrapper-side layout plumbing (plain JAX) ----
    # Input: (T_in, N, B, C_in, F) -> (B, T_in_p, N, C_in*F), zero-padded in T.
    x_r = jnp.transpose(x, (2, 0, 1, 3, 4)).reshape(B, T_in, N, CFi)
    pad = T_in_p - T_in
    if pad > 0:
        x_r = jnp.pad(x_r, ((0, 0), (0, pad), (0, 0), (0, 0)))

    # Conv weights -> lane-dense (B, kw, C_in, C_out*F) slabs.
    w_t = jnp.transpose(weight[:, :, :, 0, :], (0, 3, 2, 1))          # (B, kw, C_in, C_out)
    w_lane = jnp.broadcast_to(w_t[..., None],
                              (B, kw, C_in, C_out, F)).reshape(B, kw, C_in, CFo)
    b_lane = jnp.broadcast_to(bias[:, :, None], (B, C_out, F)).reshape(B, 1, CFo)
    g_lane = gamma.reshape(B, 1, CFo)
    beta_lane = beta.reshape(B, 1, CFo)

    kernel = functools.partial(_banded_conv_kernel, kernel_width=kw,
                               num_freq_bins=F, eps=eps)

    out_i = pl.pallas_call(
        kernel,
        out_shape=jax.ShapeDtypeStruct((B, T_out_p, N, CFo), x.dtype),
        grid=(B, n_t),
        in_specs=[
            # main time tile: rows [t*tt, (t+1)*tt)
            pl.BlockSpec((None, tt, N, CFi), lambda b, t: (b, t, 0, 0)),
            # halo: rows [(t+1)*tt, (t+1)*tt + halo_blk)  (first rows of tile t+1)
            pl.BlockSpec((None, halo_blk, N, CFi),
                         lambda b, t: (b, (t + 1) * (tt // halo_blk), 0, 0)),
            pl.BlockSpec((None, kw, C_in, CFo), lambda b, t: (b, 0, 0, 0)),
            pl.BlockSpec((None, 1, CFo), lambda b, t: (b, 0, 0)),
            pl.BlockSpec((None, 1, CFo), lambda b, t: (b, 0, 0)),
            pl.BlockSpec((None, 1, CFo), lambda b, t: (b, 0, 0)),
        ],
        out_specs=pl.BlockSpec((None, tt, N, CFo), lambda b, t: (b, t, 0, 0)),
        compiler_params=pltpu.CompilerParams(
            # Both axes independent -> megacore can shard either (v7x).
            dimension_semantics=("parallel", "parallel"),
            # Explicit VMEM budget: safely under v7x's 64 MiB physical VMEM,
            # with headroom on v5e/v6e.
            vmem_limit_bytes=48 * 1024 * 1024),
    )(x_r, x_r, w_lane, b_lane, g_lane, beta_lane)

    out = out_i[:, :T_out].reshape(B, T_out, N, C_out, F)
    return jnp.transpose(out, (1, 2, 0, 3, 4))               # (T_out, N, B, C_out, F)


def banded_conv2d_reference(x, weight, bias, gamma, beta, eps=1e-5):
    """Plain-JAX reference mirroring the PyTorch module, for verification."""
    T_in, N, B, C_in, F = x.shape
    _, C_out, _, _, kw = weight.shape
    T_out = T_in - kw + 1
    outs = []
    for b in range(B):
        xb = x[:, :, b].astype(jnp.float32)                  # (T_in, N, C_in, F)
        y = jnp.zeros((T_out, N, C_out, F), jnp.float32)
        for w_i in range(kw):
            y = y + jnp.einsum('tncf,oc->tnof',
                               xb[w_i:w_i + T_out], weight[b, :, :, 0, w_i])
        y = y + bias[b][None, None, :, None]
        y = jnp.maximum(y, 0.0)
        mean = y.mean(axis=(2, 3), keepdims=True)
        var = ((y - mean) ** 2).mean(axis=(2, 3), keepdims=True)
        y = (y - mean) / jnp.sqrt(var + eps) * gamma[b][None, None] + beta[b][None, None]
        outs.append(y)
    return jnp.stack(outs, axis=2).astype(x.dtype)


def _run_case(key, T_in, N, B, C_in, C_out, F, kw, t_tile):
    k1, k2, k3, k4, k5 = jax.random.split(key, 5)
    x = jax.random.normal(k1, (T_in, N, B, C_in, F), jnp.float32)
    # Deterministic synthetic parameters (shapes from __init__; not a checkpoint).
    weight = 0.2 * jax.random.normal(k2, (B, C_out, C_in, 1, kw), jnp.float32)
    bias = 0.1 * jax.random.normal(k3, (B, C_out), jnp.float32)
    gamma = 1.0 + 0.1 * jax.random.normal(k4, (B, C_out, F), jnp.float32)
    beta = 0.1 * jax.random.normal(k5, (B, C_out, F), jnp.float32)

    out = banded_conv2d(x, weight, bias, gamma, beta, t_tile=t_tile)
    out = jax.block_until_ready(out)

    ref = banded_conv2d_reference(x, weight, bias, gamma, beta)
    assert out.shape == (T_in - kw + 1, N, B, C_out, F), out.shape
    assert jnp.allclose(out, ref, atol=1e-4, rtol=1e-4), \
        float(jnp.max(jnp.abs(out - ref)))


if __name__ == "__main__":
    key = jax.random.PRNGKey(0)
    k_a, k_b = jax.random.split(key)

    # Small shapes consistent with the module's forward:
    # inputs (T_in, N, B, C_in, F); num_bands=3, kernel_width=3, C_out*F=128.
    _run_case(k_a, T_in=8, N=2, B=3, C_in=4, C_out=8, F=16, kw=3, t_tile=256)

    # Exercise the multi-tile + halo + T-padding path as well.
    _run_case(k_b, T_in=23, N=2, B=3, C_in=4, C_out=8, F=16, kw=3, t_tile=8)

    print("KERNEL_OK")
</pallas_src>

<mosaic_0001>
module attributes {stable_mosaic.version = 11 : i64} {
  func.func @_banded_conv_kernel(%arg0: i32, %arg1: i32, %arg2: memref<1x6x2x64xf32, #tpu.memory_space<vmem>>, %arg3: memref<1x2x2x64xf32, #tpu.memory_space<vmem>>, %arg4: memref<1x3x4x128xf32, #tpu.memory_space<vmem>>, %arg5: memref<1x1x128xf32, #tpu.memory_space<vmem>>, %arg6: memref<1x1x128xf32, #tpu.memory_space<vmem>>, %arg7: memref<1x1x128xf32, #tpu.memory_space<vmem>>, %arg8: memref<1x6x2x128xf32, #tpu.memory_space<vmem>>) attributes {dimension_semantics = [#tpu.dimension_semantics<parallel>, #tpu.dimension_semantics<parallel>], iteration_bounds = array<i64: 3, 1>, scalar_prefetch = 0 : i64, scratch_operands = 0 : i64, tpu.core_type = #tpu.core_type<tc>, window_params = [{transform_indices = @transform_0, window_bounds = array<i64: 1, 6, 2, 64>}, {transform_indices = @transform_1, window_bounds = array<i64: 1, 2, 2, 64>}, {transform_indices = @transform_2, window_bounds = array<i64: 1, 3, 4, 128>}, {transform_indices = @transform_3, window_bounds = array<i64: 1, 1, 128>}, {transform_indices = @transform_4, window_bounds = array<i64: 1, 1, 128>}, {transform_indices = @transform_5, window_bounds = array<i64: 1, 1, 128>}, {transform_indices = @transform_6, window_bounds = array<i64: 1, 6, 2, 128>}]} {
    %c0 = arith.constant 0 : index
    %c0_0 = arith.constant 0 : index
    %c0_1 = arith.constant 0 : index
    %c0_2 = arith.constant 0 : index
    %0 = vector.load %arg4[%c0, %c0_0, %c0_1, %c0_2] : memref<1x3x4x128xf32, #tpu.memory_space<vmem>>, vector<1x3x4x128xf32>
    %1 = vector.shape_cast %0 : vector<1x3x4x128xf32> to vector<3x4x128xf32>
    %cst = arith.constant 0.000000e+00 : f32
    %2 = vector.broadcast %cst : f32 to vector<6x2x128xf32>
    %c0_3 = arith.constant 0 : index
    %c0_4 = arith.constant 0 : index
    %c0_5 = arith.constant 0 : index
    %c0_6 = arith.constant 0 : index
    %3 = vector.load %arg2[%c0_3, %c0_4, %c0_5, %c0_6] : memref<1x6x2x64xf32, #tpu.memory_space<vmem>>, vector<1x6x2x16xf32>
    %4 = vector.shape_cast %3 : vector<1x6x2x16xf32> to vector<6x2x16xf32>
    %5 = tpu.concatenate %4, %4, %4, %4, %4, %4, %4, %4 in 2 : vector<6x2x16xf32>, vector<6x2x16xf32>, vector<6x2x16xf32>, vector<6x2x16xf32>, vector<6x2x16xf32>, vector<6x2x16xf32>, vector<6x2x16xf32>, vector<6x2x16xf32> -> vector<6x2x128xf32>
    %c0_7 = arith.constant 0 : index
    %c0_8 = arith.constant 0 : index
    %c0_9 = arith.constant 0 : index
    %c0_10 = arith.constant 0 : index
    %6 = vector.load %arg3[%c0_7, %c0_8, %c0_9, %c0_10] : memref<1x2x2x64xf32, #tpu.memory_space<vmem>>, vector<1x2x2x16xf32>
    %7 = vector.shape_cast %6 : vector<1x2x2x16xf32> to vector<2x2x16xf32>
    %8 = tpu.concatenate %7, %7, %7, %7, %7, %7, %7, %7 in 2 : vector<2x2x16xf32>, vector<2x2x16xf32>, vector<2x2x16xf32>, vector<2x2x16xf32>, vector<2x2x16xf32>, vector<2x2x16xf32>, vector<2x2x16xf32>, vector<2x2x16xf32> -> vector<2x2x128xf32>
    %9 = tpu.concatenate %5, %8 in 0 : vector<6x2x128xf32>, vector<2x2x128xf32> -> vector<8x2x128xf32>
    %10 = vector.extract_strided_slice %9 {offsets = [0, 0, 0], sizes = [6, 2, 128], strides = [1, 1, 1]} : vector<8x2x128xf32> to vector<6x2x128xf32>
    %11 = vector.extract_strided_slice %1 {offsets = [0, 0, 0], sizes = [1, 1, 128], strides = [1, 1, 1]} : vector<3x4x128xf32> to vector<1x1x128xf32>
    %12 = vector.shape_cast %11 : vector<1x1x128xf32> to vector<128xf32>
    %13 = vector.shape_cast %12 : vector<128xf32> to vector<1x1x128xf32>
    %14 = vector.broadcast %13 : vector<1x1x128xf32> to vector<6x2x128xf32>
    %15 = arith.mulf %10, %14 : vector<6x2x128xf32>
    %16 = arith.addf %2, %15 : vector<6x2x128xf32>
    %17 = vector.extract_strided_slice %9 {offsets = [1, 0, 0], sizes = [6, 2, 128], strides = [1, 1, 1]} : vector<8x2x128xf32> to vector<6x2x128xf32>
    %18 = vector.extract_strided_slice %1 {offsets = [1, 0, 0], sizes = [1, 1, 128], strides = [1, 1, 1]} : vector<3x4x128xf32> to vector<1x1x128xf32>
    %19 = vector.shape_cast %18 : vector<1x1x128xf32> to vector<128xf32>
    %20 = vector.shape_cast %19 : vector<128xf32> to vector<1x1x128xf32>
    %21 = vector.broadcast %20 : vector<1x1x128xf32> to vector<6x2x128xf32>
    %22 = arith.mulf %17, %21 : vector<6x2x128xf32>
    %23 = arith.addf %16, %22 : vector<6x2x128xf32>
    %24 = vector.extract_strided_slice %9 {offsets = [2, 0, 0], sizes = [6, 2, 128], strides = [1, 1, 1]} : vector<8x2x128xf32> to vector<6x2x128xf32>
    %25 = vector.extract_strided_slice %1 {offsets = [2, 0, 0], sizes = [1, 1, 128], strides = [1, 1, 1]} : vector<3x4x128xf32> to vector<1x1x128xf32>
    %26 = vector.shape_cast %25 : vector<1x1x128xf32> to vector<128xf32>
    %27 = vector.shape_cast %26 : vector<128xf32> to vector<1x1x128xf32>
    %28 = vector.broadcast %27 : vector<1x1x128xf32> to vector<6x2x128xf32>
    %29 = arith.mulf %24, %28 : vector<6x2x128xf32>
    %30 = arith.addf %23, %29 : vector<6x2x128xf32>
    %c0_11 = arith.constant 0 : index
    %c0_12 = arith.constant 0 : index
    %c0_13 = arith.constant 0 : index
    %c16 = arith.constant 16 : index
    %31 = vector.load %arg2[%c0_11, %c0_12, %c0_13, %c16] : memref<1x6x2x64xf32, #tpu.memory_space<vmem>>, vector<1x6x2x16xf32>
    %32 = vector.shape_cast %31 : vector<1x6x2x16xf32> to vector<6x2x16xf32>
    %33 = tpu.concatenate %32, %32, %32, %32, %32, %32, %32, %32 in 2 : vector<6x2x16xf32>, vector<6x2x16xf32>, vector<6x2x16xf32>, vector<6x2x16xf32>, vector<6x2x16xf32>, vector<6x2x16xf32>, vector<6x2x16xf32>, vector<6x2x16xf32> -> vector<6x2x128xf32>
    %c0_14 = arith.constant 0 : index
    %c0_15 = arith.constant 0 : index
    %c0_16 = arith.constant 0 : index
    %c16_17 = arith.constant 16 : index
    %34 = vector.load %arg3[%c0_14, %c0_15, %c0_16, %c16_17] : memref<1x2x2x64xf32, #tpu.memory_space<vmem>>, vector<1x2x2x16xf32>
    %35 = vector.shape_cast %34 : vector<1x2x2x16xf32> to vector<2x2x16xf32>
    %36 = tpu.concatenate %35, %35, %35, %35, %35, %35, %35, %35 in 2 : vector<2x2x16xf32>, vector<2x2x16xf32>, vector<2x2x16xf32>, vector<2x2x16xf32>, vector<2x2x16xf32>, vector<2x2x16xf32>, vector<2x2x16xf32>, vector<2x2x16xf32> -> vector<2x2x128xf32>
    %37 = tpu.concatenate %33, %36 in 0 : vector<6x2x128xf32>, vector<2x2x128xf32> -> vector<8x2x128xf32>
    %38 = vector.extract_strided_slice %37 {offsets = [0, 0, 0], sizes = [6, 2, 128], strides = [1, 1, 1]} : vector<8x2x128xf32> to vector<6x2x128xf32>
    %39 = vector.extract_strided_slice %1 {offsets = [0, 1, 0], sizes = [1, 1, 128], strides = [1, 1, 1]} : vector<3x4x128xf32> to vector<1x1x128xf32>
    %40 = vector.shape_cast %39 : vector<1x1x128xf32> to vector<128xf32>
    %41 = vector.shape_cast %40 : vector<128xf32> to vector<1x1x128xf32>
    %42 = vector.broadcast %41 : vector<1x1x128xf32> to vector<6x2x128xf32>
    %43 = arith.mulf %38, %42 : vector<6x2x128xf32>
    %44 = arith.addf %30, %43 : vector<6x2x128xf32>
    %45 = vector.extract_strided_slice %37 {offsets = [1, 0, 0], sizes = [6, 2, 128], strides = [1, 1, 1]} : vector<8x2x128xf32> to vector<6x2x128xf32>
    %46 = vector.extract_strided_slice %1 {offsets = [1, 1, 0], sizes = [1, 1, 128], strides = [1, 1, 1]} : vector<3x4x128xf32> to vector<1x1x128xf32>
    %47 = vector.shape_cast %46 : vector<1x1x128xf32> to vector<128xf32>
    %48 = vector.shape_cast %47 : vector<128xf32> to vector<1x1x128xf32>
    %49 = vector.broadcast %48 : vector<1x1x128xf32> to vector<6x2x128xf32>
    %50 = arith.mulf %45, %49 : vector<6x2x128xf32>
    %51 = arith.addf %44, %50 : vector<6x2x128xf32>
    %52 = vector.extract_strided_slice %37 {offsets = [2, 0, 0], sizes = [6, 2, 128], strides = [1, 1, 1]} : vector<8x2x128xf32> to vector<6x2x128xf32>
    %53 = vector.extract_strided_slice %1 {offsets = [2, 1, 0], sizes = [1, 1, 128], strides = [1, 1, 1]} : vector<3x4x128xf32> to vector<1x1x128xf32>
    %54 = vector.shape_cast %53 : vector<1x1x128xf32> to vector<128xf32>
    %55 = vector.shape_cast %54 : vector<128xf32> to vector<1x1x128xf32>
    %56 = vector.broadcast %55 : vector<1x1x128xf32> to vector<6x2x128xf32>
    %57 = arith.mulf %52, %56 : vector<6x2x128xf32>
    %58 = arith.addf %51, %57 : vector<6x2x128xf32>
    %c0_18 = arith.constant 0 : index
    %c0_19 = arith.constant 0 : index
    %c0_20 = arith.constant 0 : index
    %c32 = arith.constant 32 : index
    %59 = vector.load %arg2[%c0_18, %c0_19, %c0_20, %c32] : memref<1x6x2x64xf32, #tpu.memory_space<vmem>>, vector<1x6x2x16xf32>
    %60 = vector.shape_cast %59 : vector<1x6x2x16xf32> to vector<6x2x16xf32>
    %61 = tpu.concatenate %60, %60, %60, %60, %60, %60, %60, %60 in 2 : vector<6x2x16xf32>, vector<6x2x16xf32>, vector<6x2x16xf32>, vector<6x2x16xf32>, vector<6x2x16xf32>, vector<6x2x16xf32>, vector<6x2x16xf32>, vector<6x2x16xf32> -> vector<6x2x128xf32>
    %c0_21 = arith.constant 0 : index
    %c0_22 = arith.constant 0 : index
    %c0_23 = arith.constant 0 : index
    %c32_24 = arith.constant 32 : index
    %62 = vector.load %arg3[%c0_21, %c0_22, %c0_23, %c32_24] : memref<1x2x2x64xf32, #tpu.memory_space<vmem>>, vector<1x2x2x16xf32>
    %63 = vector.shape_cast %62 : vector<1x2x2x16xf32> to vector<2x2x16xf32>
    %64 = tpu.concatenate %63, %63, %63, %63, %63, %63, %63, %63 in 2 : vector<2x2x16xf32>, vector<2x2x16xf32>, vector<2x2x16xf32>, vector<2x2x16xf32>, vector<2x2x16xf32>, vector<2x2x16xf32>, vector<2x2x16xf32>, vector<2x2x16xf32> -> vector<2x2x128xf32>
    %65 = tpu.concatenate %61, %64 in 0 : vector<6x2x128xf32>, vector<2x2x128xf32> -> vector<8x2x128xf32>
    %66 = vector.extract_strided_slice %65 {offsets = [0, 0, 0], sizes = [6, 2, 128], strides = [1, 1, 1]} : vector<8x2x128xf32> to vector<6x2x128xf32>
    %67 = vector.extract_strided_slice %1 {offsets = [0, 2, 0], sizes = [1, 1, 128], strides = [1, 1, 1]} : vector<3x4x128xf32> to vector<1x1x128xf32>
    %68 = vector.shape_cast %67 : vector<1x1x128xf32> to vector<128xf32>
    %69 = vector.shape_cast %68 : vector<128xf32> to vector<1x1x128xf32>
    %70 = vector.broadcast %69 : vector<1x1x128xf32> to vector<6x2x128xf32>
    %71 = arith.mulf %66, %70 : vector<6x2x128xf32>
    %72 = arith.addf %58, %71 : vector<6x2x128xf32>
    %73 = vector.extract_strided_slice %65 {offsets = [1, 0, 0], sizes = [6, 2, 128], strides = [1, 1, 1]} : vector<8x2x128xf32> to vector<6x2x128xf32>
    %74 = vector.extract_strided_slice %1 {offsets = [1, 2, 0], sizes = [1, 1, 128], strides = [1, 1, 1]} : vector<3x4x128xf32> to vector<1x1x128xf32>
    %75 = vector.shape_cast %74 : vector<1x1x128xf32> to vector<128xf32>
    %76 = vector.shape_cast %75 : vector<128xf32> to vector<1x1x128xf32>
    %77 = vector.broadcast %76 : vector<1x1x128xf32> to vector<6x2x128xf32>
    %78 = arith.mulf %73, %77 : vector<6x2x128xf32>
    %79 = arith.addf %72, %78 : vector<6x2x128xf32>
    %80 = vector.extract_strided_slice %65 {offsets = [2, 0, 0], sizes = [6, 2, 128], strides = [1, 1, 1]} : vector<8x2x128xf32> to vector<6x2x128xf32>
    %81 = vector.extract_strided_slice %1 {offsets = [2, 2, 0], sizes = [1, 1, 128], strides = [1, 1, 1]} : vector<3x4x128xf32> to vector<1x1x128xf32>
    %82 = vector.shape_cast %81 : vector<1x1x128xf32> to vector<128xf32>
    %83 = vector.shape_cast %82 : vector<128xf32> to vector<1x1x128xf32>
    %84 = vector.broadcast %83 : vector<1x1x128xf32> to vector<6x2x128xf32>
    %85 = arith.mulf %80, %84 : vector<6x2x128xf32>
    %86 = arith.addf %79, %85 : vector<6x2x128xf32>
    %c0_25 = arith.constant 0 : index
    %c0_26 = arith.constant 0 : index
    %c0_27 = arith.constant 0 : index
    %c48 = arith.constant 48 : index
    %87 = vector.load %arg2[%c0_25, %c0_26, %c0_27, %c48] : memref<1x6x2x64xf32, #tpu.memory_space<vmem>>, vector<1x6x2x16xf32>
    %88 = vector.shape_cast %87 : vector<1x6x2x16xf32> to vector<6x2x16xf32>
    %89 = tpu.concatenate %88, %88, %88, %88, %88, %88, %88, %88 in 2 : vector<6x2x16xf32>, vector<6x2x16xf32>, vector<6x2x16xf32>, vector<6x2x16xf32>, vector<6x2x16xf32>, vector<6x2x16xf32>, vector<6x2x16xf32>, vector<6x2x16xf32> -> vector<6x2x128xf32>
    %c0_28 = arith.constant 0 : index
    %c0_29 = arith.constant 0 : index
    %c0_30 = arith.constant 0 : index
    %c48_31 = arith.constant 48 : index
    %90 = vector.load %arg3[%c0_28, %c0_29, %c0_30, %c48_31] : memref<1x2x2x64xf32, #tpu.memory_space<vmem>>, vector<1x2x2x16xf32>
    %91 = vector.shape_cast %90 : vector<1x2x2x16xf32> to vector<2x2x16xf32>
    %92 = tpu.concatenate %91, %91, %91, %91, %91, %91, %91, %91 in 2 : vector<2x2x16xf32>, vector<2x2x16xf32>, vector<2x2x16xf32>, vector<2x2x16xf32>, vector<2x2x16xf32>, vector<2x2x16xf32>, vector<2x2x16xf32>, vector<2x2x16xf32> -> vector<2x2x128xf32>
    %93 = tpu.concatenate %89, %92 in 0 : vector<6x2x128xf32>, vector<2x2x128xf32> -> vector<8x2x128xf32>
    %94 = vector.extract_strided_slice %93 {offsets = [0, 0, 0], sizes = [6, 2, 128], strides = [1, 1, 1]} : vector<8x2x128xf32> to vector<6x2x128xf32>
    %95 = vector.extract_strided_slice %1 {offsets = [0, 3, 0], sizes = [1, 1, 128], strides = [1, 1, 1]} : vector<3x4x128xf32> to vector<1x1x128xf32>
    %96 = vector.shape_cast %95 : vector<1x1x128xf32> to vector<128xf32>
    %97 = vector.shape_cast %96 : vector<128xf32> to vector<1x1x128xf32>
    %98 = vector.broadcast %97 : vector<1x1x128xf32> to vector<6x2x128xf32>
    %99 = arith.mulf %94, %98 : vector<6x2x128xf32>
    %100 = arith.addf %86, %99 : vector<6x2x128xf32>
    %101 = vector.extract_strided_slice %93 {offsets = [1, 0, 0], sizes = [6, 2, 128], strides = [1, 1, 1]} : vector<8x2x128xf32> to vector<6x2x128xf32>
    %102 = vector.extract_strided_slice %1 {offsets = [1, 3, 0], sizes = [1, 1, 128], strides = [1, 1, 1]} : vector<3x4x128xf32> to vector<1x1x128xf32>
    %103 = vector.shape_cast %102 : vector<1x1x128xf32> to vector<128xf32>
    %104 = vector.shape_cast %103 : vector<128xf32> to vector<1x1x128xf32>
    %105 = vector.broadcast %104 : vector<1x1x128xf32> to vector<6x2x128xf32>
    %106 = arith.mulf %101, %105 : vector<6x2x128xf32>
    %107 = arith.addf %100, %106 : vector<6x2x128xf32>
    %108 = vector.extract_strided_slice %93 {offsets = [2, 0, 0], sizes = [6, 2, 128], strides = [1, 1, 1]} : vector<8x2x128xf32> to vector<6x2x128xf32>
    %109 = vector.extract_strided_slice %1 {offsets = [2, 3, 0], sizes = [1, 1, 128], strides = [1, 1, 1]} : vector<3x4x128xf32> to vector<1x1x128xf32>
    %110 = vector.shape_cast %109 : vector<1x1x128xf32> to vector<128xf32>
    %111 = vector.shape_cast %110 : vector<128xf32> to vector<1x1x128xf32>
    %112 = vector.broadcast %111 : vector<1x1x128xf32> to vector<6x2x128xf32>
    %113 = arith.mulf %108, %112 : vector<6x2x128xf32>
    %114 = arith.addf %107, %113 : vector<6x2x128xf32>
    %c0_32 = arith.constant 0 : index
    %c0_33 = arith.constant 0 : index
    %c0_34 = arith.constant 0 : index
    %115 = vector.load %arg5[%c0_32, %c0_33, %c0_34] : memref<1x1x128xf32, #tpu.memory_space<vmem>>, vector<1x1x128xf32>
    %116 = vector.shape_cast %115 : vector<1x1x128xf32> to vector<128xf32>
    %117 = vector.shape_cast %116 : vector<128xf32> to vector<1x1x128xf32>
    %118 = vector.broadcast %117 : vector<1x1x128xf32> to vector<6x2x128xf32>
    %119 = arith.addf %114, %118 : vector<6x2x128xf32>
    %cst_35 = arith.constant 0.000000e+00 : f32
    %120 = vector.broadcast %cst_35 : f32 to vector<6x2x128xf32>
    %121 = arith.maximumf %119, %120 : vector<6x2x128xf32>
    %cst_36 = arith.constant dense<0.000000e+00> : vector<6x2xf32>
    %122 = vector.multi_reduction <add>, %121, %cst_36 [2] : vector<6x2x128xf32> to vector<6x2xf32>
    %123 = vector.shape_cast %122 : vector<6x2xf32> to vector<6x2x1xf32>
    %cst_37 = arith.constant 1.280000e+02 : f32
    %124 = vector.broadcast %cst_37 : f32 to vector<6x2x1xf32>
    %125 = arith.divf %123, %124 : vector<6x2x1xf32>
    %126 = vector.broadcast %125 : vector<6x2x1xf32> to vector<6x2x128xf32>
    %127 = arith.subf %121, %126 : vector<6x2x128xf32>
    %128 = arith.mulf %127, %127 : vector<6x2x128xf32>
    %cst_38 = arith.constant dense<0.000000e+00> : vector<6x2xf32>
    %129 = vector.multi_reduction <add>, %128, %cst_38 [2] : vector<6x2x128xf32> to vector<6x2xf32>
    %130 = vector.shape_cast %129 : vector<6x2xf32> to vector<6x2x1xf32>
    %cst_39 = arith.constant 1.280000e+02 : f32
    %131 = vector.broadcast %cst_39 : f32 to vector<6x2x1xf32>
    %132 = arith.divf %130, %131 : vector<6x2x1xf32>
    %cst_40 = arith.constant 9.99999974E-6 : f32
    %133 = vector.broadcast %cst_40 : f32 to vector<6x2x1xf32>
    %134 = arith.addf %132, %133 : vector<6x2x1xf32>
    %135 = math.rsqrt %134 : vector<6x2x1xf32>
    %136 = vector.broadcast %135 : vector<6x2x1xf32> to vector<6x2x128xf32>
    %137 = arith.mulf %127, %136 : vector<6x2x128xf32>
    %c0_41 = arith.constant 0 : index
    %c0_42 = arith.constant 0 : index
    %c0_43 = arith.constant 0 : index
    %138 = vector.load %arg6[%c0_41, %c0_42, %c0_43] : memref<1x1x128xf32, #tpu.memory_space<vmem>>, vector<1x1x128xf32>
    %139 = vector.shape_cast %138 : vector<1x1x128xf32> to vector<128xf32>
    %140 = vector.shape_cast %139 : vector<128xf32> to vector<1x1x128xf32>
    %141 = vector.broadcast %140 : vector<1x1x128xf32> to vector<6x2x128xf32>
    %142 = arith.mulf %137, %141 : vector<6x2x128xf32>
    %c0_44 = arith.constant 0 : index
    %c0_45 = arith.constant 0 : index
    %c0_46 = arith.constant 0 : index
    %143 = vector.load %arg7[%c0_44, %c0_45, %c0_46] : memref<1x1x128xf32, #tpu.memory_space<vmem>>, vector<1x1x128xf32>
    %144 = vector.shape_cast %143 : vector<1x1x128xf32> to vector<128xf32>
    %145 = vector.shape_cast %144 : vector<128xf32> to vector<1x1x128xf32>
    %146 = vector.broadcast %145 : vector<1x1x128xf32> to vector<6x2x128xf32>
    %147 = arith.addf %142, %146 : vector<6x2x128xf32>
    %c0_47 = arith.constant 0 : index
    %c0_48 = arith.constant 0 : index
    %c0_49 = arith.constant 0 : index
    %c0_50 = arith.constant 0 : index
    %148 = vector.load %arg8[%c0_47, %c0_48, %c0_49, %c0_50] : memref<1x6x2x128xf32, #tpu.memory_space<vmem>>, vector<1x6x2x128xf32>
    %149 = vector.shape_cast %148 : vector<1x6x2x128xf32> to vector<6x2x128xf32>
    %150 = vector.shape_cast %147 : vector<6x2x128xf32> to vector<1x6x2x128xf32>
    tpu.vector_store %arg8[%c0_47, %c0_48, %c0_49, %c0_50], %150 {strides = array<i32>} : memref<1x6x2x128xf32, #tpu.memory_space<vmem>>, vector<1x6x2x128xf32>,
    return
  }
  func.func @transform_0(%arg0: i32, %arg1: i32) -> (i32, i32, i32, i32) {
    %c0_i32 = arith.constant 0 : i32
    %c0_i32_0 = arith.constant 0 : i32
    %c0_i32_1 = arith.constant 0 : i32
    return %arg0, %arg1, %c0_i32, %c0_i32_0 : i32, i32, i32, i32
  }
  func.func @transform_1(%arg0: i32, %arg1: i32) -> (i32, i32, i32, i32) {
    %c1_i32 = arith.constant 1 : i32
    %0 = arith.addi %arg1, %c1_i32 : i32
    %c3_i32 = arith.constant 3 : i32
    %1 = arith.muli %0, %c3_i32 : i32
    %c0_i32 = arith.constant 0 : i32
    %c0_i32_0 = arith.constant 0 : i32
    %c0_i32_1 = arith.constant 0 : i32
    return %arg0, %1, %c0_i32, %c0_i32_0 : i32, i32, i32, i32
  }
  func.func @transform_2(%arg0: i32, %arg1: i32) -> (i32, i32, i32, i32) {
    %c0_i32 = arith.constant 0 : i32
    %c0_i32_0 = arith.constant 0 : i32
    %c0_i32_1 = arith.constant 0 : i32
    %c0_i32_2 = arith.constant 0 : i32
    return %arg0, %c0_i32, %c0_i32_0, %c0_i32_1 : i32, i32, i32, i32
  }
  func.func @transform_3(%arg0: i32, %arg1: i32) -> (i32, i32, i32) {
    %c0_i32 = arith.constant 0 : i32
    %c0_i32_0 = arith.constant 0 : i32
    %c0_i32_1 = arith.constant 0 : i32
    return %arg0, %c0_i32, %c0_i32_0 : i32, i32, i32
  }
  func.func @transform_4(%arg0: i32, %arg1: i32) -> (i32, i32, i32) {
    %c0_i32 = arith.constant 0 : i32
    %c0_i32_0 = arith.constant 0 : i32
    %c0_i32_1 = arith.constant 0 : i32
    return %arg0, %c0_i32, %c0_i32_0 : i32, i32, i32
  }
  func.func @transform_5(%arg0: i32, %arg1: i32) -> (i32, i32, i32) {
    %c0_i32 = arith.constant 0 : i32
    %c0_i32_0 = arith.constant 0 : i32
    %c0_i32_1 = arith.constant 0 : i32
    return %arg0, %c0_i32, %c0_i32_0 : i32, i32, i32
  }
  func.func @transform_6(%arg0: i32, %arg1: i32) -> (i32, i32, i32, i32) {
    %c0_i32 = arith.constant 0 : i32
    %c0_i32_0 = arith.constant 0 : i32
    %c0_i32_1 = arith.constant 0 : i32
    return %arg0, %arg1, %c0_i32, %c0_i32_0 : i32, i32, i32, i32
  }
}

</mosaic_0001>

<llo_original>
// kernel: tpu_custom_call.1
$region0: #{tpu_custom_call.1}
  #allocation0 [shape = 'u32[]', space=smem, size = 0x4, offset = 0x4, fixed_abs, tag = 'smem constant byte address 0x4 - core index']
  #allocation1 [shape = 'u32[144,128]{1,0:T(1,128)}', space=vmem, size = 0x12000, scoped, tag = 'internal scratch']
  %s0 = inlined_call_operand.hbm [shape: f32[3,8,2,64], index: 0, kind: input, shape index: {}]
  %s1 = inlined_call_operand.hbm [shape: f32[3,8,2,64], index: 1, kind: input, shape index: {}]
  %s2 = inlined_call_operand.hbm [shape: f32[3,3,4,128], index: 2, kind: input, shape index: {}]
  %s3 = inlined_call_operand.vmem [shape: f32[3,1,128], index: 3, kind: input, shape index: {}]
  %s4 = inlined_call_operand.vmem [shape: f32[3,1,128], index: 4, kind: input, shape index: {}]
  %s5 = inlined_call_operand.vmem [shape: f32[3,1,128], index: 5, kind: input, shape index: {}]
  %s6 = inlined_call_operand.hbm [shape: f32[3,6,2,128], index: 6, kind: output, shape index: {}]
  %s7 = sld [smem:[#allocation0]]
  $region69: #{tpu_custom_call.1} parent=0
    _
  %s9 = ssub.s32 1, %s7
  %s10 = scalar_select 0, %s9, %s7
  $region1: #{tpu_custom_call.1} parent=0
    #allocation2 [shape = 'u8[12288]{0}', space=vmem, size = 0x3000, scoped, tag = 'input window, operand 0']
    #allocation3 [shape = 's32[2]{0}', space=sflag, size = 0x8, scoped, tag = 'scoped memory for tpu_custom_call.1']
    #allocation4 [shape = 's32[2]{0}', space=sflag, size = 0x8, scoped, tag = 'scoped memory for tpu_custom_call.1']
    #allocation5 [shape = 'u8[4096]{0}', space=vmem, size = 0x1000, scoped, tag = 'input window, operand 1']
    #allocation6 [shape = 's32[2]{0}', space=sflag, size = 0x8, scoped, tag = 'scoped memory for tpu_custom_call.1']
    #allocation7 [shape = 'u8[12288]{0}', space=vmem, size = 0x3000, scoped, tag = 'input window, operand 2']
    #allocation8 [shape = 'u8[12288]{0}', space=vmem, size = 0x3000, scoped, tag = 'output window, operand 0']
    %11 = vsyncpa [#allocation3], 0
    %s12 = scalar_lea.sflag [#allocation3], 1
    %13 = vsyncpa %s12, 0
    %14 = vsyncpa [#allocation6], 0
    %s15 = scalar_lea.sflag [#allocation6], 1
    %16 = vsyncpa %s15, 0
    %17 = vsyncpa [#allocation4], 0
    %s18 = scalar_lea.sflag [#allocation4], 1
    %19 = vsyncpa %s18, 0
    loop: start=0, step=1, limit=5
    $region2: #{tpu_custom_call.1} parent=1 // loop_pre_header
      _
    $region3: #{tpu_custom_call.1} parent=1 // loop_header
      %s21 = sphi 0, %s25
      %p22 = scmp.ge.s32.totalorder %s21, 5
      %s28 = sphi 0, %s40
      %s29 = sphi 0, %s36
      %s30 = sphi 0, %s28
      %s31 = sphi 0, %s29
      %s32 = sphi 0, %s30
      %s33 = sphi 0, %s31
      %s45 = sphi 0, %s47
      %s48 = sphi 0, %s45
      %s49 = sphi 0, %s48
      %s65 = sphi 0, %s49
      %s77 = sphi 0, %s79
      %s80 = sphi 0, %s77
      %s81 = sphi 0, %s80
      %s97 = sphi 0, %s81
      %s103 = sphi 0, %s105
      %s106 = sphi 0, %s103
      %s107 = sphi 0, %s106
      %s123 = sphi 0, %s107
      %s129 = sphi 0, %s131
      %s132 = sphi 0, %s129
      %s133 = sphi 0, %s132
      %s149 = sphi 0, %s133
      %s155 = sphi 0, %s157
      %s158 = sphi 0, %s155
      %s159 = sphi 0, %s158
      %s175 = sphi 0, %s159
      %s181 = sphi 0, %s183
      %s184 = sphi 0, %s181
      %s185 = sphi 0, %s184
      %s201 = sphi 0, %s185
      %s209 = sphi 0, %s211
      %s212 = sphi 0, %s209
      %s213 = sphi 0, %s212
      %s229 = sphi 0, %s213
    $region4: #{tpu_custom_call.1} parent=1 // loop_header_branch
      %24 = sbr.rel (%p22) target = $region8
    $region5: #{tpu_custom_call.1} parent=1 // loop_body
      %s26 = ssub.s32 %s21, 1
      %s27 = ssub.s32 %s21, 2
      %s34 = sadd.s32 1, %s29
      %p35 = scmp.ge.s32.totalorder %s34, 1
      %s36 = scalar_select %p35, 0, %s34
      %s37 = sadd.s32 1, %s28
      %s38 = scalar_select %p35, %s37, %s28
      %p39 = scmp.ge.s32.totalorder %s38, 3
      %s40 = scalar_select %p39, 0, %s38
      %s41 = ssub.s32 %s28, %s40
      %s42 = ssub.s32 %s29, %s36
      %s43 = sor.u32 %s41, %s42
      %p44 = scmp.eq.s32.totalorder %s43, 0
      %s46 = sadd.s32 %s45, 1
      %s47 = scalar_select %p44, %s45, %s46
      %p50 = pneg %p44
      %p51 = scmp.eq.s32.totalorder %s21, 2
      %p52 = por %p50, %p51
      %p53 = scmp.ne.s32.totalorder %s45, %s48
      %p54 = scmp.eq.s32.totalorder %s21, 0
      %p55 = por %p53, %p54
      %p56 = scmp.ne.s32.totalorder %s45, %s48
      %p57 = scmp.eq.s32.totalorder %s26, 2
      %p58 = por %p56, %p57
      %p59 = scmp.ne.s32.totalorder %s48, %s49
      %p60 = scmp.eq.s32.totalorder %s26, 0
      %p61 = por %p59, %p60
      %p62 = scmp.ne.s32.totalorder %s48, %s49
      %p63 = scmp.eq.s32.totalorder %s27, 2
      %p64 = por %p62, %p63
      %p66 = scmp.ne.s32.totalorder %s49, %s65
      %p67 = scmp.eq.s32.totalorder %s27, 0
      %p68 = por %p66, %p67
      %s69 = sadd.s32 %s29, 1
      %s70 = smul.u32 %s69, 3
      %s71 = sadd.s32 %s36, 1
      %s72 = smul.u32 %s71, 3
      %s73 = ssub.s32 %s28, %s40
      %s74 = ssub.s32 %s70, %s72
      %s75 = sor.u32 %s73, %s74
      %p76 = scmp.eq.s32.totalorder %s75, 0
      %s78 = sadd.s32 %s77, 1
      %s79 = scalar_select %p76, %s77, %s78
      %p82 = pneg %p76
      %p83 = scmp.eq.s32.totalorder %s21, 2
      %p84 = por %p82, %p83
      %p85 = scmp.ne.s32.totalorder %s77, %s80
      %p86 = scmp.eq.s32.totalorder %s21, 0
      %p87 = por %p85, %p86
      %p88 = scmp.ne.s32.totalorder %s77, %s80
      %p89 = scmp.eq.s32.totalorder %s26, 2
      %p90 = por %p88, %p89
      %p91 = scmp.ne.s32.totalorder %s80, %s81
      %p92 = scmp.eq.s32.totalorder %s26, 0
      %p93 = por %p91, %p92
      %p94 = scmp.ne.s32.totalorder %s80, %s81
      %p95 = scmp.eq.s32.totalorder %s27, 2
      %p96 = por %p94, %p95
      %p98 = scmp.ne.s32.totalorder %s81, %s97
      %p99 = scmp.eq.s32.totalorder %s27, 0
      %p100 = por %p98, %p99
      %s101 = ssub.s32 %s28, %s40
      %p102 = scmp.eq.s32.totalorder %s101, 0
      %s104 = sadd.s32 %s103, 1
      %s105 = scalar_select %p102, %s103, %s104
      %p108 = pneg %p102
      %p109 = scmp.eq.s32.totalorder %s21, 2
      %p110 = por %p108, %p109
      %p111 = scmp.ne.s32.totalorder %s103, %s106
      %p112 = scmp.eq.s32.totalorder %s21, 0
      %p113 = por %p111, %p112
      %p114 = scmp.ne.s32.totalorder %s103, %s106
      %p115 = scmp.eq.s32.totalorder %s26, 2
      %p116 = por %p114, %p115
      %p117 = scmp.ne.s32.totalorder %s106, %s107
      %p118 = scmp.eq.s32.totalorder %s26, 0
      %p119 = por %p117, %p118
      %p120 = scmp.ne.s32.totalorder %s106, %s107
      %p121 = scmp.eq.s32.totalorder %s27, 2
      %p122 = por %p120, %p121
      %p124 = scmp.ne.s32.totalorder %s107, %s123
      %p125 = scmp.eq.s32.totalorder %s27, 0
      %p126 = por %p124, %p125
      %s127 = ssub.s32 %s28, %s40
      %p128 = scmp.eq.s32.totalorder %s127, 0
      %s130 = sadd.s32 %s129, 1
      %s131 = scalar_select %p128, %s129, %s130
      %p134 = pneg %p128
      %p135 = scmp.eq.s32.totalorder %s21, 2
      %p136 = por %p134, %p135
      %p137 = scmp.ne.s32.totalorder %s129, %s132
      %p138 = scmp.eq.s32.totalorder %s21, 0
      %p139 = por %p137, %p138
      %p140 = scmp.ne.s32.totalorder %s129, %s132
      %p141 = scmp.eq.s32.totalorder %s26, 2
      %p142 = por %p140, %p141
      %p143 = scmp.ne.s32.totalorder %s132, %s133
      %p144 = scmp.eq.s32.totalorder %s26, 0
      %p145 = por %p143, %p144
      %p146 = scmp.ne.s32.totalorder %s132, %s133
      %p147 = scmp.eq.s32.totalorder %s27, 2
      %p148 = por %p146, %p147
      %p150 = scmp.ne.s32.totalorder %s133, %s149
      %p151 = scmp.eq.s32.totalorder %s27, 0
      %p152 = por %p150, %p151
      %s153 = ssub.s32 %s28, %s40
      %p154 = scmp.eq.s32.totalorder %s153, 0
      %s156 = sadd.s32 %s155, 1
      %s157 = scalar_select %p154, %s155, %s156
      %p160 = pneg %p154
      %p161 = scmp.eq.s32.totalorder %s21, 2
      %p162 = por %p160, %p161
      %p163 = scmp.ne.s32.totalorder %s155, %s158
      %p164 = scmp.eq.s32.totalorder %s21, 0
      %p165 = por %p163, %p164
      %p166 = scmp.ne.s32.totalorder %s155, %s158
      %p167 = scmp.eq.s32.totalorder %s26, 2
      %p168 = por %p166, %p167
      %p169 = scmp.ne.s32.totalorder %s158, %s159
      %p170 = scmp.eq.s32.totalorder %s26, 0
      %p171 = por %p169, %p170
      %p172 = scmp.ne.s32.totalorder %s158, %s159
      %p173 = scmp.eq.s32.totalorder %s27, 2
      %p174 = por %p172, %p173
      %p176 = scmp.ne.s32.totalorder %s159, %s175
      %p177 = scmp.eq.s32.totalorder %s27, 0
      %p178 = por %p176, %p177
      %s179 = ssub.s32 %s28, %s40
      %p180 = scmp.eq.s32.totalorder %s179, 0
      %s182 = sadd.s32 %s181, 1
      %s183 = scalar_select %p180, %s181, %s182
      %p186 = pneg %p180
      %p187 = scmp.eq.s32.totalorder %s21, 2
      %p188 = por %p186, %p187
      %p189 = scmp.ne.s32.totalorder %s181, %s184
      %p190 = scmp.eq.s32.totalorder %s21, 0
      %p191 = por %p189, %p190
      %p192 = scmp.ne.s32.totalorder %s181, %s184
      %p193 = scmp.eq.s32.totalorder %s26, 2
      %p194 = por %p192, %p193
      %p195 = scmp.ne.s32.totalorder %s184, %s185
      %p196 = scmp.eq.s32.totalorder %s26, 0
      %p197 = por %p195, %p196
      %p198 = scmp.ne.s32.totalorder %s184, %s185
      %p199 = scmp.eq.s32.totalorder %s27, 2
      %p200 = por %p198, %p199
      %p202 = scmp.ne.s32.totalorder %s185, %s201
      %p203 = scmp.eq.s32.totalorder %s27, 0
      %p204 = por %p202, %p203
      %s205 = ssub.s32 %s28, %s40
      %s206 = ssub.s32 %s29, %s36
      %s207 = sor.u32 %s205, %s206
      %p208 = scmp.eq.s32.totalorder %s207, 0
      %s210 = sadd.s32 %s209, 1
      %s211 = scalar_select %p208, %s209, %s210
      %p214 = pneg %p208
      %p215 = scmp.eq.s32.totalorder %s21, 2
      %p216 = por %p214, %p215
      %p217 = scmp.ne.s32.totalorder %s209, %s212
      %p218 = scmp.eq.s32.totalorder %s21, 0
      %p219 = por %p217, %p218
      %p220 = scmp.ne.s32.totalorder %s209, %s212
      %p221 = scmp.eq.s32.totalorder %s26, 2
      %p222 = por %p220, %p221
      %p223 = scmp.ne.s32.totalorder %s212, %s213
      %p224 = scmp.eq.s32.totalorder %s26, 0
      %p225 = por %p223, %p224
      %p226 = scmp.ne.s32.totalorder %s212, %s213
      %p227 = scmp.eq.s32.totalorder %s27, 2
      %p228 = por %p226, %p227
      %p230 = scmp.ne.s32.totalorder %s213, %s229
      %p231 = scmp.eq.s32.totalorder %s27, 0
      %p232 = por %p230, %p231
      %p233 = scmp.le.s32.totalorder 1, %s21
      %p234 = scmp.lt.s32.totalorder %s21, 4
      %p235 = pnand %p233, %p234
      %p236 = pneg %p235
      // Predicated region
      $region9: #{tpu_custom_call.1} parent=5 // pred_check
        _
      $region10: #{tpu_custom_call.1} parent=5 // pred_check_branch
        %238 = sbr.rel (%p235) target = $region12
      $region11: #{tpu_custom_call.1} parent=5 // pred_region
        %s239 = ssub.s32 %s21, 1
      $region12: #{tpu_custom_call.1} parent=5 // pred_fallthru
        _
      %p240 = scmp.lt.s32.totalorder %s21, 3
      // Predicated region
      $region13: #{tpu_custom_call.1} parent=5 // pred_check
        %p241 = pneg %p240
      $region14: #{tpu_custom_call.1} parent=5 // pred_check_branch
        %243 = sbr.rel (%p241) target = $region16
      $region15: #{tpu_custom_call.1} parent=5 // pred_region
        // Predicated region
        $region17: #{tpu_custom_call.1} parent=15 // pred_check
          %p244 = pneg %p55
        $region18: #{tpu_custom_call.1} parent=15 // pred_check_branch
          %246 = sbr.rel (%p244) target = $region20
        $region19: #{tpu_custom_call.1} parent=15 // pred_region
          %s247 = sand.u32 %s45, 1
          %s248 = scalar_lea.sflag [#allocation3], %s247
          %s249 = sand.u32 %s45, 1
          %s250 = smul.addr %s249, 12
          %s251 = scalar_lea.vmem [#allocation2], %s250
          %s252 = smul.u32 6, %s29
          %s253 = ssub.s32 8, %s252
          %p254 = scmp.lt.s32.totalorder %s253, 6
          %s255 = scalar_select %p254, %s253, 6
          %s256 = smul.u32 32, %s255
          %s258 = ssub.s32 192, %s256
          %259 = vsyncadd %s248, %s258
          %p260 = scmp.ne.s32.totalorder 0, %s256
          %s261 = smul.addr %s28, 8
          %s262 = sadd.s32 %s252, %s261
          %s263 = smul.addr %s262, 32
          %s264 = scalar_lea.hbm %s0, %s263
          %s265 = smul.u32 2, %s255
          %s266 = sshll.u32 %s251, 4
          %s267 = int_to_ptr.vmem [resolvable:$true] %s266
          %s268 = sshll.u32 %s265, 4
          %272 = dma.hbm_to_vmem [thread:$0]  (%p260), %s264, %s268, %s267, %s248, 32, 32, 2
        $region20: #{tpu_custom_call.1} parent=15 // pred_fallthru
          _
        // Predicated region
        $region21: #{tpu_custom_call.1} parent=15 // pred_check
          %p273 = pneg %p87
        $region22: #{tpu_custom_call.1} parent=15 // pred_check_branch
          %275 = sbr.rel (%p273) target = $region24
        $region23: #{tpu_custom_call.1} parent=15 // pred_region
          %s276 = sand.u32 %s21, 1
          %s277 = scalar_lea.sflag [#allocation6], %s276
          %s278 = sand.u32 %s77, 1
          %s279 = smul.addr %s278, 4
          %s280 = scalar_lea.vmem [#allocation5], %s279
          %s281 = sadd.s32 %s29, 1
          %s282 = smul.u32 %s281, 3
          %s283 = smul.u32 2, %s282
          %s285 = ssub.s32 64, 64
          %286 = vsyncadd %s277, %s285
          %s287 = smul.addr %s28, 8
          %s288 = sadd.s32 %s283, %s287
          %s289 = smul.addr %s288, 32
          %s290 = scalar_lea.hbm %s1, %s289
          %s291 = sshll.u32 %s280, 4
          %s292 = int_to_ptr.vmem [resolvable:$true] %s291
          %297 = dma.hbm_to_vmem [thread:$0]  %s290, 64, %s292, %s277, 32, 32, 2
        $region24: #{tpu_custom_call.1} parent=15 // pred_fallthru
          _
        // Predicated region
        $region25: #{tpu_custom_call.1} parent=15 // pred_check
          %p298 = pneg %p113
        $region26: #{tpu_custom_call.1} parent=15 // pred_check_branch
          %300 = sbr.rel (%p298) target = $region28
        $region27: #{tpu_custom_call.1} parent=15 // pred_region
          %s301 = sand.u32 %s21, 1
          %s302 = scalar_lea.sflag [#allocation6], %s301
          %s303 = sand.u32 %s103, 1
          %s304 = smul.addr %s303, 12
          %s305 = scalar_lea.vmem [#allocation7], %s304
          %s307 = ssub.s32 192, 192
          %308 = vsyncadd %s302, %s307
          %s309 = smul.addr %s28, 3
          %s310 = smul.addr %s309, 64
          %s311 = scalar_lea.hbm %s2, %s310
          %s312 = sshll.u32 %s305, 4
          %s313 = int_to_ptr.vmem [resolvable:$true] %s312
          %318 = dma.hbm_to_vmem [thread:$0]  %s311, 192, %s313, %s302, 64, 64, 4
        $region28: #{tpu_custom_call.1} parent=15 // pred_fallthru
          _
        // Predicated region
        $region29: #{tpu_custom_call.1} parent=15 // pred_check
          %p319 = pneg %p139
        $region30: #{tpu_custom_call.1} parent=15 // pred_check_branch
          %321 = sbr.rel (%p319) target = $region32
        $region31: #{tpu_custom_call.1} parent=15 // pred_region
          %p322 = scmp.lt.s32.totalorder %s28, 2
          %s323 = scalar_select %p322, %s28, 2
          %s324 = scalar_lea.vmem %s3, %s323
        $region32: #{tpu_custom_call.1} parent=15 // pred_fallthru
          _
        // Predicated region
        $region33: #{tpu_custom_call.1} parent=15 // pred_check
          %p325 = pneg %p165
        $region34: #{tpu_custom_call.1} parent=15 // pred_check_branch
          %327 = sbr.rel (%p325) target = $region36
        $region35: #{tpu_custom_call.1} parent=15 // pred_region
          %p328 = scmp.lt.s32.totalorder %s28, 2
          %s329 = scalar_select %p328, %s28, 2
          %s330 = scalar_lea.vmem %s4, %s329
        $region36: #{tpu_custom_call.1} parent=15 // pred_fallthru
          _
        // Predicated region
        $region37: #{tpu_custom_call.1} parent=15 // pred_check
          %p331 = pneg %p191
        $region38: #{tpu_custom_call.1} parent=15 // pred_check_branch
          %333 = sbr.rel (%p331) target = $region40
        $region39: #{tpu_custom_call.1} parent=15 // pred_region
          %p334 = scmp.lt.s32.totalorder %s28, 2
          %s335 = scalar_select %p334, %s28, 2
          %s336 = scalar_lea.vmem %s5, %s335
        $region40: #{tpu_custom_call.1} parent=15 // pred_fallthru
          _
      $region16: #{tpu_custom_call.1} parent=5 // pred_fallthru
        _
      %p337 = scmp.le.s32.totalorder 1, %s21
      %p338 = scmp.lt.s32.totalorder %s21, 4
      %p339 = pnand %p337, %p338
      %p340 = pneg %p339
      // Predicated region
      $region41: #{tpu_custom_call.1} parent=5 // pred_check
        _
      $region42: #{tpu_custom_call.1} parent=5 // pred_check_branch
        %342 = sbr.rel (%p339) target = $region44
      $region43: #{tpu_custom_call.1} parent=5 // pred_region
        %s343 = ssub.s32 %s21, 1
        %s344 = sand.u32 %s48, 1
        %s345 = scalar_lea.sflag [#allocation3], %s344
        %s346 = sand.u32 %s48, 1
        %s347 = smul.addr %s346, 12
        %s348 = scalar_lea.vmem [#allocation2], %s347
        // Predicated region
        $region45: #{tpu_custom_call.1} parent=43 // pred_check
          %p349 = pneg %p61
        $region46: #{tpu_custom_call.1} parent=43 // pred_check_branch
          %351 = sbr.rel (%p349) target = $region48
        $region47: #{tpu_custom_call.1} parent=43 // pred_region
          %352 = dma.done %s345, 192
        $region48: #{tpu_custom_call.1} parent=43 // pred_fallthru
          _
        %s353 = sand.u32 %s26, 1
        %s354 = scalar_lea.sflag [#allocation6], %s353
        %s355 = sand.u32 %s80, 1
        %s356 = smul.addr %s355, 4
        %s357 = scalar_lea.vmem [#allocation5], %s356
        // Predicated region
        $region49: #{tpu_custom_call.1} parent=43 // pred_check
          %p358 = pneg %p93
        $region50: #{tpu_custom_call.1} parent=43 // pred_check_branch
          %360 = sbr.rel (%p358) target = $region52
        $region51: #{tpu_custom_call.1} parent=43 // pred_region
          %361 = dma.done %s354, 64
        $region52: #{tpu_custom_call.1} parent=43 // pred_fallthru
          _
        %s362 = sand.u32 %s26, 1
        %s363 = scalar_lea.sflag [#allocation6], %s362
        %s364 = sand.u32 %s106, 1
        %s365 = smul.addr %s364, 12
        %s366 = scalar_lea.vmem [#allocation7], %s365
        // Predicated region
        $region53: #{tpu_custom_call.1} parent=43 // pred_check
          %p367 = pneg %p119
        $region54: #{tpu_custom_call.1} parent=43 // pred_check_branch
          %369 = sbr.rel (%p367) target = $region56
        $region55: #{tpu_custom_call.1} parent=43 // pred_region
          %370 = dma.done %s363, 192
        $region56: #{tpu_custom_call.1} parent=43 // pred_fallthru
          _
        %s371 = sand.u32 %s48, 1
        %s372 = scalar_lea.sflag [#allocation3], %s371
        %s373 = sand.u32 %s48, 1
        %s374 = smul.addr %s373, 12
        %s375 = scalar_lea.vmem [#allocation2], %s374
        %p376 = pneg %p61
        %p377 = pneg %p58
        %s378 = sand.u32 %s26, 1
        %s379 = scalar_lea.sflag [#allocation6], %s378
        %s380 = sand.u32 %s80, 1
        %s381 = smul.addr %s380, 4
        %s382 = scalar_lea.vmem [#allocation5], %s381
        %p383 = pneg %p93
        %p384 = pneg %p90
        %s385 = sand.u32 %s26, 1
        %s386 = scalar_lea.sflag [#allocation6], %s385
        %s387 = sand.u32 %s106, 1
        %s388 = smul.addr %s387, 12
        %s389 = scalar_lea.vmem [#allocation7], %s388
        %p390 = pneg %p119
        %p391 = pneg %p116
        %p392 = scmp.lt.s32.totalorder %s30, 2
        %s393 = scalar_select %p392, %s30, 2
        %s394 = scalar_lea.vmem %s3, %s393
        %p395 = pneg %p145
        %p396 = pneg %p142
        %p397 = scmp.lt.s32.totalorder %s30, 2
        %s398 = scalar_select %p397, %s30, 2
        %s399 = scalar_lea.vmem %s4, %s398
        %p400 = pneg %p171
        %p401 = pneg %p168
        %p402 = scmp.lt.s32.totalorder %s30, 2
        %s403 = scalar_select %p402, %s30, 2
        %s404 = scalar_lea.vmem %s5, %s403
        %p405 = pneg %p197
        %p406 = pneg %p194
        %p407 = pneg %p225
        %p408 = pneg %p222
        %s409 = sand.u32 %s212, 1
        %s410 = scalar_lea.sflag [#allocation4], %s409
        %s411 = sand.u32 %s212, 1
        %s412 = smul.addr %s411, 12
        %s413 = scalar_lea.vmem [#allocation8], %s412
        %s414 = smul.u32 6, %s31
        %s415 = ssub.s32 8, %s414
        %p416 = scmp.lt.s32.totalorder %s415, 6
        %s417 = scalar_select %p416, %s415, 6
        %s418 = smul.u32 32, %s417
        %s419 = sadd.s32 %s31, 1
        %s420 = smul.u32 %s419, 3
        %s421 = smul.u32 2, %s420
        %p422 = scmp.lt.s32.totalorder %s30, 2
        %s423 = scalar_select %p422, %s30, 2
        %s424 = scalar_lea.vmem %s3, %s423
        %p425 = scmp.lt.s32.totalorder %s30, 2
        %s426 = scalar_select %p425, %s30, 2
        %s427 = scalar_lea.vmem %s4, %s426
        %p428 = scmp.lt.s32.totalorder %s30, 2
        %s429 = scalar_select %p428, %s30, 2
        %s430 = scalar_lea.vmem %s5, %s429
        %s431 = smul.u32 6, %s31
        %v432 = vld [vmem:[%s366] sm:$0xf]
        %v433 = vld [vmem:[%s366 + $0x4] sm:$0xf]
        %v434 = vld [vmem:[%s366 + $0x8] sm:$0xf]
        %v435 = vld [vmem:[%s348] sm:$0x3]
        %v436 = vld [vmem:[%s348 + $0x2] sm:$0x3]
        %v437 = vld [vmem:[%s348 + $0x4] sm:$0x3]
        %v438 = vld [vmem:[%s348 + $0x6] sm:$0x3]
        %v439 = vld [vmem:[%s348 + $0x8] sm:$0x3]
        %v440 = vld [vmem:[%s348 + $0xa] sm:$0x3]
        %447 = vrot.lane.b32.xlu0 %v435, 16
        %v448 = vpop.permute.xlu0 %447
        %449 = vrot.lane.b32.xlu0 %v436, 16
        %v450 = vpop.permute.xlu0 %449
        %451 = vrot.lane.b32.xlu0 %v437, 16
        %v452 = vpop.permute.xlu0 %451
        %453 = vrot.lane.b32.xlu0 %v438, 16
        %v454 = vpop.permute.xlu0 %453
        %455 = vrot.lane.b32.xlu0 %v439, 16
        %v456 = vpop.permute.xlu0 %455
        %457 = vrot.lane.b32.xlu0 %v440, 16
        %v458 = vpop.permute.xlu0 %457
        %465 = vrot.lane.b32.xlu0 %v435, 32
        %v466 = vpop.permute.xlu0 %465
        %467 = vrot.lane.b32.xlu0 %v436, 32
        %v468 = vpop.permute.xlu0 %467
        %469 = vrot.lane.b32.xlu0 %v437, 32
        %v470 = vpop.permute.xlu0 %469
        %471 = vrot.lane.b32.xlu0 %v438, 32
        %v472 = vpop.permute.xlu0 %471
        %473 = vrot.lane.b32.xlu0 %v439, 32
        %v474 = vpop.permute.xlu0 %473
        %475 = vrot.lane.b32.xlu0 %v440, 32
        %v476 = vpop.permute.xlu0 %475
        %483 = vrot.lane.b32.xlu0 %v435, 48
        %v484 = vpop.permute.xlu0 %483
        %485 = vrot.lane.b32.xlu0 %v436, 48
        %v486 = vpop.permute.xlu0 %485
        %487 = vrot.lane.b32.xlu0 %v437, 48
        %v488 = vpop.permute.xlu0 %487
        %489 = vrot.lane.b32.xlu0 %v438, 48
        %v490 = vpop.permute.xlu0 %489
        %491 = vrot.lane.b32.xlu0 %v439, 48
        %v492 = vpop.permute.xlu0 %491
        %493 = vrot.lane.b32.xlu0 %v440, 48
        %v494 = vpop.permute.xlu0 %493
        %501 = vrot.lane.b32.xlu0 %v435, 64
        %v502 = vpop.permute.xlu0 %501
        %503 = vrot.lane.b32.xlu0 %v436, 64
        %v504 = vpop.permute.xlu0 %503
        %505 = vrot.lane.b32.xlu0 %v437, 64
        %v506 = vpop.permute.xlu0 %505
        %507 = vrot.lane.b32.xlu0 %v438, 64
        %v508 = vpop.permute.xlu0 %507
        %509 = vrot.lane.b32.xlu0 %v439, 64
        %v510 = vpop.permute.xlu0 %509
        %511 = vrot.lane.b32.xlu0 %v440, 64
        %v512 = vpop.permute.xlu0 %511
        %519 = vrot.lane.b32.xlu0 %v435, 80
        %v520 = vpop.permute.xlu0 %519
        %521 = vrot.lane.b32.xlu0 %v436, 80
        %v522 = vpop.permute.xlu0 %521
        %523 = vrot.lane.b32.xlu0 %v437, 80
        %v524 = vpop.permute.xlu0 %523
        %525 = vrot.lane.b32.xlu0 %v438, 80
        %v526 = vpop.permute.xlu0 %525
        %527 = vrot.lane.b32.xlu0 %v439, 80
        %v528 = vpop.permute.xlu0 %527
        %529 = vrot.lane.b32.xlu0 %v440, 80
        %v530 = vpop.permute.xlu0 %529
        %537 = vrot.lane.b32.xlu0 %v435, 96
        %v538 = vpop.permute.xlu0 %537
        %539 = vrot.lane.b32.xlu0 %v436, 96
        %v540 = vpop.permute.xlu0 %539
        %541 = vrot.lane.b32.xlu0 %v437, 96
        %v542 = vpop.permute.xlu0 %541
        %543 = vrot.lane.b32.xlu0 %v438, 96
        %v544 = vpop.permute.xlu0 %543
        %545 = vrot.lane.b32.xlu0 %v439, 96
        %v546 = vpop.permute.xlu0 %545
        %547 = vrot.lane.b32.xlu0 %v440, 96
        %v548 = vpop.permute.xlu0 %547
        %555 = vrot.lane.b32.xlu0 %v435, 112
        %v556 = vpop.permute.xlu0 %555
        %557 = vrot.lane.b32.xlu0 %v436, 112
        %v558 = vpop.permute.xlu0 %557
        %559 = vrot.lane.b32.xlu0 %v437, 112
        %v560 = vpop.permute.xlu0 %559
        %561 = vrot.lane.b32.xlu0 %v438, 112
        %v562 = vpop.permute.xlu0 %561
        %563 = vrot.lane.b32.xlu0 %v439, 112
        %v564 = vpop.permute.xlu0 %563
        %565 = vrot.lane.b32.xlu0 %v440, 112
        %v566 = vpop.permute.xlu0 %565
        %vm573 = vcmask 130048
        %v574 = vsel %vm573, %v435, %v448
        %v575 = vsel %vm573, %v436, %v450
        %v576 = vsel %vm573, %v437, %v452
        %v577 = vsel %vm573, %v438, %v454
        %v578 = vsel %vm573, %v439, %v456
        %v579 = vsel %vm573, %v440, %v458
        %vm580 = vcmask 261120
        %v581 = vsel %vm580, %v574, %v466
        %v582 = vsel %vm580, %v575, %v468
        %v583 = vsel %vm580, %v576, %v470
        %v584 = vsel %vm580, %v577, %v472
        %v585 = vsel %vm580, %v578, %v474
        %v586 = vsel %vm580, %v579, %v476
        %vm587 = vcmask 392192
        %v588 = vsel %vm587, %v581, %v484
        %v589 = vsel %vm587, %v582, %v486
        %v590 = vsel %vm587, %v583, %v488
        %v591 = vsel %vm587, %v584, %v490
        %v592 = vsel %vm587, %v585, %v492
        %v593 = vsel %vm587, %v586, %v494
        %vm594 = vcmask 523264
        %v595 = vsel %vm594, %v588, %v502
        %v596 = vsel %vm594, %v589, %v504
        %v597 = vsel %vm594, %v590, %v506
        %v598 = vsel %vm594, %v591, %v508
        %v599 = vsel %vm594, %v592, %v510
        %v600 = vsel %vm594, %v593, %v512
        %vm601 = vcmask 654336
        %v602 = vsel %vm601, %v595, %v520
        %v603 = vsel %vm601, %v596, %v522
        %v604 = vsel %vm601, %v597, %v524
        %v605 = vsel %vm601, %v598, %v526
        %v606 = vsel %vm601, %v599, %v528
        %v607 = vsel %vm601, %v600, %v530
        %vm608 = vcmask 785408
        %v609 = vsel %vm608, %v602, %v538
        %v610 = vsel %vm608, %v603, %v540
        %v611 = vsel %vm608, %v604, %v542
        %v612 = vsel %vm608, %v605, %v544
        %v613 = vsel %vm608, %v606, %v546
        %v614 = vsel %vm608, %v607, %v548
        %vm615 = vcmask 916480
        %v616 = vsel %vm615, %v609, %v556
        %v617 = vsel %vm615, %v610, %v558
        %v618 = vsel %vm615, %v611, %v560
        %v619 = vsel %vm615, %v612, %v562
        %v620 = vsel %vm615, %v613, %v564
        %v621 = vsel %vm615, %v614, %v566
        %v622 = vld [vmem:[%s357] sm:$0x3]
        %v623 = vld [vmem:[%s357 + $0x2] sm:$0x3]
        %626 = vrot.lane.b32.xlu0 %v622, 16
        %v627 = vpop.permute.xlu0 %626
        %628 = vrot.lane.b32.xlu0 %v623, 16
        %v629 = vpop.permute.xlu0 %628
        %632 = vrot.lane.b32.xlu0 %v622, 32
        %v633 = vpop.permute.xlu0 %632
        %634 = vrot.lane.b32.xlu0 %v623, 32
        %v635 = vpop.permute.xlu0 %634
        %638 = vrot.lane.b32.xlu0 %v622, 48
        %v639 = vpop.permute.xlu0 %638
        %640 = vrot.lane.b32.xlu0 %v623, 48
        %v641 = vpop.permute.xlu0 %640
        %644 = vrot.lane.b32.xlu0 %v622, 64
        %v645 = vpop.permute.xlu0 %644
        %646 = vrot.lane.b32.xlu0 %v623, 64
        %v647 = vpop.permute.xlu0 %646
        %650 = vrot.lane.b32.xlu0 %v622, 80
        %v651 = vpop.permute.xlu0 %650
        %652 = vrot.lane.b32.xlu0 %v623, 80
        %v653 = vpop.permute.xlu0 %652
        %656 = vrot.lane.b32.xlu0 %v622, 96
        %v657 = vpop.permute.xlu0 %656
        %658 = vrot.lane.b32.xlu0 %v623, 96
        %v659 = vpop.permute.xlu0 %658
        %662 = vrot.lane.b32.xlu0 %v622, 112
        %v663 = vpop.permute.xlu0 %662
        %664 = vrot.lane.b32.xlu0 %v623, 112
        %v665 = vpop.permute.xlu0 %664
        %v668 = vsel %vm573, %v622, %v627
        %v669 = vsel %vm573, %v623, %v629
        %v670 = vsel %vm580, %v668, %v633
        %v671 = vsel %vm580, %v669, %v635
        %v672 = vsel %vm587, %v670, %v639
        %v673 = vsel %vm587, %v671, %v641
        %v674 = vsel %vm594, %v672, %v645
        %v675 = vsel %vm594, %v673, %v647
        %v676 = vsel %vm601, %v674, %v651
        %v677 = vsel %vm601, %v675, %v653
        %v678 = vsel %vm608, %v676, %v657
        %v679 = vsel %vm608, %v677, %v659
        %v680 = vsel %vm615, %v678, %v663
        %v681 = vsel %vm615, %v679, %v665
        %v682 = vlaneseq
        %v683 = vshrl.u32 %v682, 7
        %v684 = vsub.s32 0, %v683
        %v685 = vrot.slane %v432, %v684
        %v686 = vmul.f32 %v616, %v685
        %v687 = vmul.f32 %v617, %v685
        %v688 = vmul.f32 %v618, %v685
        %v689 = vmul.f32 %v619, %v685
        %v690 = vmul.f32 %v620, %v685
        %v691 = vmul.f32 %v621, %v685
        %v692 = vadd.f32 %v686, 0.0
        %v693 = vadd.f32 %v687, 0.0
        %v694 = vadd.f32 %v688, 0.0
        %v695 = vadd.f32 %v689, 0.0
        %v696 = vadd.f32 %v690, 0.0
        %v697 = vadd.f32 %v691, 0.0
        %v698 = vlaneseq
        %v699 = vshrl.u32 %v698, 7
        %v700 = vsub.s32 0, %v699
        %v701 = vrot.slane %v433, %v700
        %v702 = vmul.f32 %v617, %v701
        %v703 = vmul.f32 %v618, %v701
        %v704 = vmul.f32 %v619, %v701
        %v705 = vmul.f32 %v620, %v701
        %v706 = vmul.f32 %v621, %v701
        %v707 = vmul.f32 %v680, %v701
        %v708 = vadd.f32 %v692, %v702
        %v709 = vadd.f32 %v693, %v703
        %v710 = vadd.f32 %v694, %v704
        %v711 = vadd.f32 %v695, %v705
        %v712 = vadd.f32 %v696, %v706
        %v713 = vadd.f32 %v697, %v707
        %v714 = vlaneseq
        %v715 = vshrl.u32 %v714, 7
        %v716 = vsub.s32 0, %v715
        %v717 = vrot.slane %v434, %v716
        %v718 = vmul.f32 %v618, %v717
        %v719 = vmul.f32 %v619, %v717
        %v720 = vmul.f32 %v620, %v717
        %v721 = vmul.f32 %v621, %v717
        %v722 = vmul.f32 %v680, %v717
        %v723 = vmul.f32 %v681, %v717
        %v724 = vadd.f32 %v708, %v718
        %v725 = vadd.f32 %v709, %v719
        %v726 = vadd.f32 %v710, %v720
        %v727 = vadd.f32 %v711, %v721
        %v728 = vadd.f32 %v712, %v722
        %v729 = vadd.f32 %v713, %v723
        %v730 = vsel %vm573, %v556, %v435
        %v731 = vsel %vm573, %v558, %v436
        %v732 = vsel %vm573, %v560, %v437
        %v733 = vsel %vm573, %v562, %v438
        %v734 = vsel %vm573, %v564, %v439
        %v735 = vsel %vm573, %v566, %v440
        %v736 = vsel %vm580, %v730, %v448
        %v737 = vsel %vm580, %v731, %v450
        %v738 = vsel %vm580, %v732, %v452
        %v739 = vsel %vm580, %v733, %v454
        %v740 = vsel %vm580, %v734, %v456
        %v741 = vsel %vm580, %v735, %v458
        %v742 = vsel %vm587, %v736, %v466
        %v743 = vsel %vm587, %v737, %v468
        %v744 = vsel %vm587, %v738, %v470
        %v745 = vsel %vm587, %v739, %v472
        %v746 = vsel %vm587, %v740, %v474
        %v747 = vsel %vm587, %v741, %v476
        %v748 = vsel %vm594, %v742, %v484
        %v749 = vsel %vm594, %v743, %v486
        %v750 = vsel %vm594, %v744, %v488
        %v751 = vsel %vm594, %v745, %v490
        %v752 = vsel %vm594, %v746, %v492
        %v753 = vsel %vm594, %v747, %v494
        %v754 = vsel %vm601, %v748, %v502
        %v755 = vsel %vm601, %v749, %v504
        %v756 = vsel %vm601, %v750, %v506
        %v757 = vsel %vm601, %v751, %v508
        %v758 = vsel %vm601, %v752, %v510
        %v759 = vsel %vm601, %v753, %v512
        %v760 = vsel %vm608, %v754, %v520
        %v761 = vsel %vm608, %v755, %v522
        %v762 = vsel %vm608, %v756, %v524
        %v763 = vsel %vm608, %v757, %v526
        %v764 = vsel %vm608, %v758, %v528
        %v765 = vsel %vm608, %v759, %v530
        %v766 = vsel %vm615, %v760, %v538
        %v767 = vsel %vm615, %v761, %v540
        %v768 = vsel %vm615, %v762, %v542
        %v769 = vsel %vm615, %v763, %v544
        %v770 = vsel %vm615, %v764, %v546
        %v771 = vsel %vm615, %v765, %v548
        %v772 = vsel %vm573, %v663, %v622
        %v773 = vsel %vm573, %v665, %v623
        %v774 = vsel %vm580, %v772, %v627
        %v775 = vsel %vm580, %v773, %v629
        %v776 = vsel %vm587, %v774, %v633
        %v777 = vsel %vm587, %v775, %v635
        %v778 = vsel %vm594, %v776, %v639
        %v779 = vsel %vm594, %v777, %v641
        %v780 = vsel %vm601, %v778, %v645
        %v781 = vsel %vm601, %v779, %v647
        %v782 = vsel %vm608, %v780, %v651
        %v783 = vsel %vm608, %v781, %v653
        %v784 = vsel %vm615, %v782, %v657
        %v785 = vsel %vm615, %v783, %v659
        %v786 = vlaneseq
        %v787 = vshrl.u32 %v786, 7
        %v788 = vsub.s32 1, %v787
        %v789 = vrot.slane %v432, %v788
        %v790 = vmul.f32 %v766, %v789
        %v791 = vmul.f32 %v767, %v789
        %v792 = vmul.f32 %v768, %v789
        %v793 = vmul.f32 %v769, %v789
        %v794 = vmul.f32 %v770, %v789
        %v795 = vmul.f32 %v771, %v789
        %v796 = vadd.f32 %v724, %v790
        %v797 = vadd.f32 %v725, %v791
        %v798 = vadd.f32 %v726, %v792
        %v799 = vadd.f32 %v727, %v793
        %v800 = vadd.f32 %v728, %v794
        %v801 = vadd.f32 %v729, %v795
        %v802 = vlaneseq
        %v803 = vshrl.u32 %v802, 7
        %v804 = vsub.s32 1, %v803
        %v805 = vrot.slane %v433, %v804
        %v806 = vmul.f32 %v767, %v805
        %v807 = vmul.f32 %v768, %v805
        %v808 = vmul.f32 %v769, %v805
        %v809 = vmul.f32 %v770, %v805
        %v810 = vmul.f32 %v771, %v805
        %v811 = vmul.f32 %v784, %v805
        %v812 = vadd.f32 %v796, %v806
        %v813 = vadd.f32 %v797, %v807
        %v814 = vadd.f32 %v798, %v808
        %v815 = vadd.f32 %v799, %v809
        %v816 = vadd.f32 %v800, %v810
        %v817 = vadd.f32 %v801, %v811
        %v818 = vlaneseq
        %v819 = vshrl.u32 %v818, 7
        %v820 = vsub.s32 1, %v819
        %v821 = vrot.slane %v434, %v820
        %v822 = vmul.f32 %v768, %v821
        %v823 = vmul.f32 %v769, %v821
        %v824 = vmul.f32 %v770, %v821
        %v825 = vmul.f32 %v771, %v821
        %v826 = vmul.f32 %v784, %v821
        %v827 = vmul.f32 %v785, %v821
        %v828 = vadd.f32 %v812, %v822
        %v829 = vadd.f32 %v813, %v823
        %v830 = vadd.f32 %v814, %v824
        %v831 = vadd.f32 %v815, %v825
        %v832 = vadd.f32 %v816, %v826
        %v833 = vadd.f32 %v817, %v827
        %v834 = vsel %vm573, %v538, %v556
        %v835 = vsel %vm573, %v540, %v558
        %v836 = vsel %vm573, %v542, %v560
        %v837 = vsel %vm573, %v544, %v562
        %v838 = vsel %vm573, %v546, %v564
        %v839 = vsel %vm573, %v548, %v566
        %v840 = vsel %vm580, %v834, %v435
        %v841 = vsel %vm580, %v835, %v436
        %v842 = vsel %vm580, %v836, %v437
        %v843 = vsel %vm580, %v837, %v438
        %v844 = vsel %vm580, %v838, %v439
        %v845 = vsel %vm580, %v839, %v440
        %v846 = vsel %vm587, %v840, %v448
        %v847 = vsel %vm587, %v841, %v450
        %v848 = vsel %vm587, %v842, %v452
        %v849 = vsel %vm587, %v843, %v454
        %v850 = vsel %vm587, %v844, %v456
        %v851 = vsel %vm587, %v845, %v458
        %v852 = vsel %vm594, %v846, %v466
        %v853 = vsel %vm594, %v847, %v468
        %v854 = vsel %vm594, %v848, %v470
        %v855 = vsel %vm594, %v849, %v472
        %v856 = vsel %vm594, %v850, %v474
        %v857 = vsel %vm594, %v851, %v476
        %v858 = vsel %vm601, %v852, %v484
        %v859 = vsel %vm601, %v853, %v486
        %v860 = vsel %vm601, %v854, %v488
        %v861 = vsel %vm601, %v855, %v490
        %v862 = vsel %vm601, %v856, %v492
        %v863 = vsel %vm601, %v857, %v494
        %v864 = vsel %vm608, %v858, %v502
        %v865 = vsel %vm608, %v859, %v504
        %v866 = vsel %vm608, %v860, %v506
        %v867 = vsel %vm608, %v861, %v508
        %v868 = vsel %vm608, %v862, %v510
        %v869 = vsel %vm608, %v863, %v512
        %v870 = vsel %vm615, %v864, %v520
        %v871 = vsel %vm615, %v865, %v522
        %v872 = vsel %vm615, %v866, %v524
        %v873 = vsel %vm615, %v867, %v526
        %v874 = vsel %vm615, %v868, %v528
        %v875 = vsel %vm615, %v869, %v530
        %v876 = vsel %vm573, %v657, %v663
        %v877 = vsel %vm573, %v659, %v665
        %v878 = vsel %vm580, %v876, %v622
        %v879 = vsel %vm580, %v877, %v623
        %v880 = vsel %vm587, %v878, %v627
        %v881 = vsel %vm587, %v879, %v629
        %v882 = vsel %vm594, %v880, %v633
        %v883 = vsel %vm594, %v881, %v635
        %v884 = vsel %vm601, %v882, %v639
        %v885 = vsel %vm601, %v883, %v641
        %v886 = vsel %vm608, %v884, %v645
        %v887 = vsel %vm608, %v885, %v647
        %v888 = vsel %vm615, %v886, %v651
        %v889 = vsel %vm615, %v887, %v653
        %v890 = vlaneseq
        %v891 = vshrl.u32 %v890, 7
        %v892 = vsub.s32 2, %v891
        %v893 = vrot.slane %v432, %v892
        %v894 = vmul.f32 %v870, %v893
        %v895 = vmul.f32 %v871, %v893
        %v896 = vmul.f32 %v872, %v893
        %v897 = vmul.f32 %v873, %v893
        %v898 = vmul.f32 %v874, %v893
        %v899 = vmul.f32 %v875, %v893
        %v900 = vadd.f32 %v828, %v894
        %v901 = vadd.f32 %v829, %v895
        %v902 = vadd.f32 %v830, %v896
        %v903 = vadd.f32 %v831, %v897
        %v904 = vadd.f32 %v832, %v898
        %v905 = vadd.f32 %v833, %v899
        %v906 = vlaneseq
        %v907 = vshrl.u32 %v906, 7
        %v908 = vsub.s32 2, %v907
        %v909 = vrot.slane %v433, %v908
        %v910 = vmul.f32 %v871, %v909
        %v911 = vmul.f32 %v872, %v909
        %v912 = vmul.f32 %v873, %v909
        %v913 = vmul.f32 %v874, %v909
        %v914 = vmul.f32 %v875, %v909
        %v915 = vmul.f32 %v888, %v909
        %v916 = vadd.f32 %v900, %v910
        %v917 = vadd.f32 %v901, %v911
        %v918 = vadd.f32 %v902, %v912
        %v919 = vadd.f32 %v903, %v913
        %v920 = vadd.f32 %v904, %v914
        %v921 = vadd.f32 %v905, %v915
        %v922 = vlaneseq
        %v923 = vshrl.u32 %v922, 7
        %v924 = vsub.s32 2, %v923
        %v925 = vrot.slane %v434, %v924
        %v926 = vmul.f32 %v872, %v925
        %v927 = vmul.f32 %v873, %v925
        %v928 = vmul.f32 %v874, %v925
        %v929 = vmul.f32 %v875, %v925
        %v930 = vmul.f32 %v888, %v925
        %v931 = vmul.f32 %v889, %v925
        %v932 = vadd.f32 %v916, %v926
        %v933 = vadd.f32 %v917, %v927
        %v934 = vadd.f32 %v918, %v928
        %v935 = vadd.f32 %v919, %v929
        %v936 = vadd.f32 %v920, %v930
        %v937 = vadd.f32 %v921, %v931
        %v938 = vsel %vm573, %v520, %v538
        %v939 = vsel %vm573, %v522, %v540
        %v940 = vsel %vm573, %v524, %v542
        %v941 = vsel %vm573, %v526, %v544
        %v942 = vsel %vm573, %v528, %v546
        %v943 = vsel %vm573, %v530, %v548
        %v944 = vsel %vm580, %v938, %v556
        %v945 = vsel %vm580, %v939, %v558
        %v946 = vsel %vm580, %v940, %v560
        %v947 = vsel %vm580, %v941, %v562
        %v948 = vsel %vm580, %v942, %v564
        %v949 = vsel %vm580, %v943, %v566
        %v950 = vsel %vm587, %v944, %v435
        %v951 = vsel %vm587, %v945, %v436
        %v952 = vsel %vm587, %v946, %v437
        %v953 = vsel %vm587, %v947, %v438
        %v954 = vsel %vm587, %v948, %v439
        %v955 = vsel %vm587, %v949, %v440
        %v956 = vsel %vm594, %v950, %v448
        %v957 = vsel %vm594, %v951, %v450
        %v958 = vsel %vm594, %v952, %v452
        %v959 = vsel %vm594, %v953, %v454
        %v960 = vsel %vm594, %v954, %v456
        %v961 = vsel %vm594, %v955, %v458
        %v962 = vsel %vm601, %v956, %v466
        %v963 = vsel %vm601, %v957, %v468
        %v964 = vsel %vm601, %v958, %v470
        %v965 = vsel %vm601, %v959, %v472
        %v966 = vsel %vm601, %v960, %v474
        %v967 = vsel %vm601, %v961, %v476
        %v968 = vsel %vm608, %v962, %v484
        %v969 = vsel %vm608, %v963, %v486
        %v970 = vsel %vm608, %v964, %v488
        %v971 = vsel %vm608, %v965, %v490
        %v972 = vsel %vm608, %v966, %v492
        %v973 = vsel %vm608, %v967, %v494
        %v974 = vsel %vm615, %v968, %v502
        %v975 = vsel %vm615, %v969, %v504
        %v976 = vsel %vm615, %v970, %v506
        %v977 = vsel %vm615, %v971, %v508
        %v978 = vsel %vm615, %v972, %v510
        %v979 = vsel %vm615, %v973, %v512
        %v980 = vsel %vm573, %v651, %v657
        %v981 = vsel %vm573, %v653, %v659
        %v982 = vsel %vm580, %v980, %v663
        %v983 = vsel %vm580, %v981, %v665
        %v984 = vsel %vm587, %v982, %v622
        %v985 = vsel %vm587, %v983, %v623
        %v986 = vsel %vm594, %v984, %v627
        %v987 = vsel %vm594, %v985, %v629
        %v988 = vsel %vm601, %v986, %v633
        %v989 = vsel %vm601, %v987, %v635
        %v990 = vsel %vm608, %v988, %v639
        %v991 = vsel %vm608, %v989, %v641
        %v992 = vsel %vm615, %v990, %v645
        %v993 = vsel %vm615, %v991, %v647
        %v994 = vlaneseq
        %v995 = vshrl.u32 %v994, 7
        %v996 = vsub.s32 3, %v995
        %v997 = vrot.slane %v432, %v996
        %v998 = vmul.f32 %v974, %v997
        %v999 = vmul.f32 %v975, %v997
        %v1000 = vmul.f32 %v976, %v997
        %v1001 = vmul.f32 %v977, %v997
        %v1002 = vmul.f32 %v978, %v997
        %v1003 = vmul.f32 %v979, %v997
        %v1004 = vadd.f32 %v932, %v998
        %v1005 = vadd.f32 %v933, %v999
        %v1006 = vadd.f32 %v934, %v1000
        %v1007 = vadd.f32 %v935, %v1001
        %v1008 = vadd.f32 %v936, %v1002
        %v1009 = vadd.f32 %v937, %v1003
        %v1010 = vlaneseq
        %v1011 = vshrl.u32 %v1010, 7
        %v1012 = vsub.s32 3, %v1011
        %v1013 = vrot.slane %v433, %v1012
        %v1014 = vmul.f32 %v975, %v1013
        %v1015 = vmul.f32 %v976, %v1013
        %v1016 = vmul.f32 %v977, %v1013
        %v1017 = vmul.f32 %v978, %v1013
        %v1018 = vmul.f32 %v979, %v1013
        %v1019 = vmul.f32 %v992, %v1013
        %v1020 = vadd.f32 %v1004, %v1014
        %v1021 = vadd.f32 %v1005, %v1015
        %v1022 = vadd.f32 %v1006, %v1016
        %v1023 = vadd.f32 %v1007, %v1017
        %v1024 = vadd.f32 %v1008, %v1018
        %v1025 = vadd.f32 %v1009, %v1019
        %v1026 = vlaneseq
        %v1027 = vshrl.u32 %v1026, 7
        %v1028 = vsub.s32 3, %v1027
        %v1029 = vrot.slane %v434, %v1028
        %v1030 = vmul.f32 %v976, %v1029
        %v1031 = vmul.f32 %v977, %v1029
        %v1032 = vmul.f32 %v978, %v1029
        %v1033 = vmul.f32 %v979, %v1029
        %v1034 = vmul.f32 %v992, %v1029
        %v1035 = vmul.f32 %v993, %v1029
        %v1036 = vadd.f32 %v1020, %v1030
        %v1037 = vadd.f32 %v1021, %v1031
        %v1038 = vadd.f32 %v1022, %v1032
        %v1039 = vadd.f32 %v1023, %v1033
        %v1040 = vadd.f32 %v1024, %v1034
        %v1041 = vadd.f32 %v1025, %v1035
        %v1042 = vld [vmem:[%s424] sm:$0x1]
        %v1044 = vlaneseq
        %v1045 = vshrl.u32 %v1044, 7
        %v1046 = vsub.s32 0, %v1045
        %v1047 = vrot.slane %v1042, %v1046
        %v1049 = vadd.f32 %v1036, %v1047
        %v1050 = vadd.f32 %v1037, %v1047
        %v1051 = vadd.f32 %v1038, %v1047
        %v1052 = vadd.f32 %v1039, %v1047
        %v1053 = vadd.f32 %v1040, %v1047
        %v1054 = vadd.f32 %v1041, %v1047
        %v1055 = vmax.f32 %v1049, 0.0
        %v1056 = vmax.f32 %v1050, 0.0
        %v1057 = vmax.f32 %v1051, 0.0
        %v1058 = vmax.f32 %v1052, 0.0
        %v1059 = vmax.f32 %v1053, 0.0
        %v1060 = vmax.f32 %v1054, 0.0
        %vm1061 = vcmask 1041408
        %v1062 = vsel %vm1061, %v1055, 0.0
        %1063 = vadd.xlane.f32.xlu0 %v1062
        %v1064 = vpop.xlane.xlu0 %1063
        %v1065 = vsel %vm1061, %v1056, 0.0
        %1066 = vadd.xlane.f32.xlu0 %v1065
        %v1067 = vpop.xlane.xlu0 %1066
        %v1068 = vsel %vm1061, %v1057, 0.0
        %1069 = vadd.xlane.f32.xlu0 %v1068
        %v1070 = vpop.xlane.xlu0 %1069
        %v1071 = vsel %vm1061, %v1058, 0.0
        %1072 = vadd.xlane.f32.xlu0 %v1071
        %v1073 = vpop.xlane.xlu0 %1072
        %v1074 = vsel %vm1061, %v1059, 0.0
        %1075 = vadd.xlane.f32.xlu0 %v1074
        %v1076 = vpop.xlane.xlu0 %1075
        %v1077 = vsel %vm1061, %v1060, 0.0
        %1078 = vadd.xlane.f32.xlu0 %v1077
        %v1079 = vpop.xlane.xlu0 %1078
        %v1080 = vrcp.pop 128.0
        %v1081 = vmul.f32 %v1064, %v1080
        %v1082 = vmul.f32 %v1067, %v1080
        %v1083 = vmul.f32 %v1070, %v1080
        %v1084 = vmul.f32 %v1073, %v1080
        %v1085 = vmul.f32 %v1076, %v1080
        %v1086 = vmul.f32 %v1079, %v1080
        %v1087 = vsub.f32 %v1055, %v1081
        %v1088 = vsub.f32 %v1056, %v1082
        %v1089 = vsub.f32 %v1057, %v1083
        %v1090 = vsub.f32 %v1058, %v1084
        %v1091 = vsub.f32 %v1059, %v1085
        %v1092 = vsub.f32 %v1060, %v1086
        %v1093 = vmul.f32 %v1087, %v1087
        %v1094 = vmul.f32 %v1088, %v1088
        %v1095 = vmul.f32 %v1089, %v1089
        %v1096 = vmul.f32 %v1090, %v1090
        %v1097 = vmul.f32 %v1091, %v1091
        %v1098 = vmul.f32 %v1092, %v1092
        %v1099 = vsel %vm1061, %v1093, 0.0
        %1100 = vadd.xlane.f32.xlu0 %v1099
        %v1101 = vpop.xlane.xlu0 %1100
        %v1102 = vsel %vm1061, %v1094, 0.0
        %1103 = vadd.xlane.f32.xlu0 %v1102
        %v1104 = vpop.xlane.xlu0 %1103
        %v1105 = vsel %vm1061, %v1095, 0.0
        %1106 = vadd.xlane.f32.xlu0 %v1105
        %v1107 = vpop.xlane.xlu0 %1106
        %v1108 = vsel %vm1061, %v1096, 0.0
        %1109 = vadd.xlane.f32.xlu0 %v1108
        %v1110 = vpop.xlane.xlu0 %1109
        %v1111 = vsel %vm1061, %v1097, 0.0
        %1112 = vadd.xlane.f32.xlu0 %v1111
        %v1113 = vpop.xlane.xlu0 %1112
        %v1114 = vsel %vm1061, %v1098, 0.0
        %1115 = vadd.xlane.f32.xlu0 %v1114
        %v1116 = vpop.xlane.xlu0 %1115
        %v1117 = vmul.f32 %v1101, %v1080
        %v1118 = vmul.f32 %v1104, %v1080
        %v1119 = vmul.f32 %v1107, %v1080
        %v1120 = vmul.f32 %v1110, %v1080
        %v1121 = vmul.f32 %v1113, %v1080
        %v1122 = vmul.f32 %v1116, %v1080
        %v1123 = vadd.f32 %v1117, 1e-05
        %v1124 = vadd.f32 %v1118, 1e-05
        %v1125 = vadd.f32 %v1119, 1e-05
        %v1126 = vadd.f32 %v1120, 1e-05
        %v1127 = vadd.f32 %v1121, 1e-05
        %v1128 = vadd.f32 %v1122, 1e-05
        %v1129 = vrsqrt.pop %v1123
        %v1130 = vrsqrt.pop %v1124
        %v1131 = vrsqrt.pop %v1125
        %v1132 = vrsqrt.pop %v1126
        %v1133 = vrsqrt.pop %v1127
        %v1134 = vrsqrt.pop %v1128
        %v1135 = vmul.f32 %v1087, %v1129
        %v1136 = vmul.f32 %v1088, %v1130
        %v1137 = vmul.f32 %v1089, %v1131
        %v1138 = vmul.f32 %v1090, %v1132
        %v1139 = vmul.f32 %v1091, %v1133
        %v1140 = vmul.f32 %v1092, %v1134
        %v1141 = vld [vmem:[%s427] sm:$0x1]
        %v1143 = vlaneseq
        %v1144 = vshrl.u32 %v1143, 7
        %v1145 = vsub.s32 0, %v1144
        %v1146 = vrot.slane %v1141, %v1145
        %v1148 = vmul.f32 %v1135, %v1146
        %v1149 = vmul.f32 %v1136, %v1146
        %v1150 = vmul.f32 %v1137, %v1146
        %v1151 = vmul.f32 %v1138, %v1146
        %v1152 = vmul.f32 %v1139, %v1146
        %v1153 = vmul.f32 %v1140, %v1146
        %v1154 = vld [vmem:[%s430] sm:$0x1]
        %v1156 = vlaneseq
        %v1157 = vshrl.u32 %v1156, 7
        %v1158 = vsub.s32 0, %v1157
        %v1159 = vrot.slane %v1154, %v1158
        %v1161 = vadd.f32 %v1148, %v1159
        %v1162 = vadd.f32 %v1149, %v1159
        %v1163 = vadd.f32 %v1150, %v1159
        %v1164 = vadd.f32 %v1151, %v1159
        %v1165 = vadd.f32 %v1152, %v1159
        %v1166 = vadd.f32 %v1153, %v1159
        %1167 = vst [vmem:[%s413] sm:$0x3] %v1161
        %1168 = vst [vmem:[%s413 + $0x2] sm:$0x3] %v1162
        %1169 = vst [vmem:[%s413 + $0x4] sm:$0x3] %v1163
        %1170 = vst [vmem:[%s413 + $0x6] sm:$0x3] %v1164
        %1171 = vst [vmem:[%s413 + $0x8] sm:$0x3] %v1165
        %1172 = vst [vmem:[%s413 + $0xa] sm:$0x3] %v1166
        %s1173 = sand.u32 %s212, 1
        %s1174 = scalar_lea.sflag [#allocation4], %s1173
        %s1175 = sand.u32 %s212, 1
        %s1176 = smul.addr %s1175, 12
        %s1177 = scalar_lea.vmem [#allocation8], %s1176
        // Predicated region
        $region57: #{tpu_custom_call.1} parent=43 // pred_check
          %p1178 = pneg %p222
        $region58: #{tpu_custom_call.1} parent=43 // pred_check_branch
          %1180 = sbr.rel (%p1178) target = $region60
        $region59: #{tpu_custom_call.1} parent=43 // pred_region
          %s1181 = smul.u32 6, %s31
          %s1183 = ssub.s32 192, 192
          %1184 = vsyncadd %s1174, %s1183
          %s1185 = smul.addr %s30, 6
          %s1186 = sadd.s32 %s1181, %s1185
          %s1187 = smul.addr %s1186, 32
          %s1188 = scalar_lea.hbm %s6, %s1187
          %s1189 = sshll.u32 %s1177, 4
          %s1190 = int_to_ptr.vmem [resolvable:$true] %s1189
          %1195 = dma.vmem_to_hbm [thread:$0]  %s1190, 192, %s1188, %s1174, 32, 32, 2
        $region60: #{tpu_custom_call.1} parent=43 // pred_fallthru
          _
      $region44: #{tpu_custom_call.1} parent=5 // pred_fallthru
        _
      %p1196 = scmp.le.s32.totalorder 2, %s21
      // Predicated region
      $region61: #{tpu_custom_call.1} parent=5 // pred_check
        %p1197 = pneg %p1196
      $region62: #{tpu_custom_call.1} parent=5 // pred_check_branch
        %1199 = sbr.rel (%p1197) target = $region64
      $region63: #{tpu_custom_call.1} parent=5 // pred_region
        %s1200 = ssub.s32 %s21, 2
        // Predicated region
        $region65: #{tpu_custom_call.1} parent=63 // pred_check
          %p1201 = pneg %p228
        $region66: #{tpu_custom_call.1} parent=63 // pred_check_branch
          %1203 = sbr.rel (%p1201) target = $region68
        $region67: #{tpu_custom_call.1} parent=63 // pred_region
          %s1204 = sand.u32 %s213, 1
          %s1205 = scalar_lea.sflag [#allocation4], %s1204
          %s1206 = sand.u32 %s213, 1
          %s1207 = smul.addr %s1206, 12
          %s1208 = scalar_lea.vmem [#allocation8], %s1207
          %1209 = dma.done %s1205, 192
        $region68: #{tpu_custom_call.1} parent=63 // pred_fallthru
          _
      $region64: #{tpu_custom_call.1} parent=5 // pred_fallthru
        _
    $region6: #{tpu_custom_call.1} parent=1 // loop_footer
      %s25 = sadd.s32 1, %s21
    $region7: #{tpu_custom_call.1} parent=1 // loop_footer_branch
      %20 = sbr.rel target = $region3
    $region8: #{tpu_custom_call.1} parent=1 // loop_exit
      _
    %1210 = vsyncpa [#allocation3], 1
    %s1211 = scalar_lea.sflag [#allocation3], 1
    %1212 = vsyncpa %s1211, 1
    %1213 = vsyncpa [#allocation6], 1
    %s1214 = scalar_lea.sflag [#allocation6], 1
    %1215 = vsyncpa %s1214, 1
    %1216 = vsyncpa [#allocation4], 1
    %s1217 = scalar_lea.sflag [#allocation4], 1
    %1218 = vsyncpa %s1217, 1

</llo_original>
